<compile_context>
chip_gen: v7x
topology: tpu7x:2x2x1
jax: 0.10.0
libtpu: 0.0.40
codegen_flags: <defaults>
</compile_context>

<pallas_src>
import functools

import jax
import jax.numpy as jnp
from jax import lax
from jax.experimental import pallas as pl
from jax.experimental.pallas import tpu as pltpu

EPS = 1e-5
_MM_DTYPE = jnp.bfloat16     # MXU operand dtype; accumulation stays f32


# ---------------------------------------------------------------------------
# Kernels
# ---------------------------------------------------------------------------
def _stage1_kernel(x_ref, m_ref, *out_refs, stride, ho, f1, woc, has_sc):
    """3x3 conv1 (circular pad + stride folded into the band weights / row layout)
    with the 1x1 shortcut conv folded in as extra output columns.  Emits the pre-BN
    conv1 result, the pre-BN shortcut result (if any) and merged BN statistics."""
    if has_sc:
        y1_ref, sc_ref, st_ref = out_refs
    else:
        (y1_ref, st_ref), sc_ref = out_refs, None

    if stride == 1:
        x = x_ref[0]                                           # (ho, f1)
        up = jnp.concatenate([x[ho - 1:], x[:ho - 1]], axis=0)   # row r-1 (wrap)
        dn = jnp.concatenate([x[1:], x[:1]], axis=0)             # row r+1 (wrap)
        lhs = jnp.concatenate([up, x, dn], axis=1)             # (ho, 3*f1)
    else:
        # (ho, 2*f1) view: each row holds the fused pair [input row 2r | row 2r+1],
        # i.e. the dh=1 and dh=2 taps; dh=0 (row 2r-1) is the previous row's odd half.
        xp = x_ref[0]
        odd = xp[:, f1:]
        prev_odd = jnp.concatenate([odd[ho - 1:], odd[:ho - 1]], axis=0)
        lhs = jnp.concatenate([prev_odd, xp], axis=1)          # (ho, 3*f1)

    acc = jnp.dot(lhs.astype(_MM_DTYPE), m_ref[...],
                  preferred_element_type=jnp.float32)          # (ho, ncol1) f32
    y1_ref[0] = acc[:, :woc]
    if has_sc:
        sc_ref[0] = acc[:, woc:]
    st_ref[0] = jnp.concatenate(
        [jnp.sum(acc, axis=0, keepdims=True),
         jnp.sum(acc * acc, axis=0, keepdims=True)], axis=0)


def _stage2_kernel(y1_ref, a_ref, c_ref, m_ref, y2_ref, st_ref, *, ho):
    """BN1 + ReLU (computed once, hoisted) fused into the stride-1 3x3 conv2.
    Emits pre-BN conv2 output and merged BN statistics."""
    h = jnp.maximum(a_ref[...] * y1_ref[0] + c_ref[...], 0.0)   # (ho, woc) f32
    up = jnp.concatenate([h[ho - 1:], h[:ho - 1]], axis=0)
    dn = jnp.concatenate([h[1:], h[:1]], axis=0)
    lhs = jnp.concatenate([up, h, dn], axis=1)                  # (ho, 3*woc)
    acc = jnp.dot(lhs.astype(_MM_DTYPE), m_ref[...],
                  preferred_element_type=jnp.float32)
    y2_ref[0] = acc
    st_ref[0] = jnp.concatenate(
        [jnp.sum(acc, axis=0, keepdims=True),
         jnp.sum(acc * acc, axis=0, keepdims=True)], axis=0)


def _finalize_kernel(y2_ref, idn_ref, a2_ref, c2_ref, as_ref, cs_ref, out_ref):
    """out = relu(BN2(conv2) + BN_s(shortcut));  identity path uses a_s=1, c_s=0."""
    out_ref[0] = jnp.maximum(
        a2_ref[...] * y2_ref[0] + c2_ref[...]
        + as_ref[...] * idn_ref[0] + cs_ref[...], 0.0)


# ---------------------------------------------------------------------------
# Wrapper-side helpers (pure indexing / tiny per-channel math)
# ---------------------------------------------------------------------------
def _build_band_matrix(w_hwio, w_in, wo, stride, n_col, col_base):
    """Banded width-Toeplitz matrix (3, w_in*Cin, n_col): output-width column block
    wo_i gets kernel tap dw at input width index (stride*wo_i + dw - 1) mod w_in
    (circular padding=1 folded in).  Row axis is later flattened to 3*w_in*Cin in
    dh-major order to match the kernel's [row-1 | row | row+1] LHS layout."""
    _, _, cin, cout = w_hwio.shape
    m = jnp.zeros((3, w_in * cin, n_col), jnp.float32)
    for wo_i in range(wo):
        for dw in range(3):
            wi = (stride * wo_i + dw - 1) % w_in
            m = m.at[:, wi * cin:(wi + 1) * cin,
                     col_base + wo_i * cout:col_base + (wo_i + 1) * cout].set(
                         w_hwio[:, dw])
    return m


def _add_shortcut_band(m, ws_io, w_in, wo, stride, col_base):
    """Fold the 1x1 stride-s shortcut conv into the dh==1 (centre-tap) band."""
    cin, cout = ws_io.shape
    for wo_i in range(wo):
        wi = (stride * wo_i) % w_in
        m = m.at[1, wi * cin:(wi + 1) * cin,
                 col_base + wo_i * cout:col_base + (wo_i + 1) * cout].set(ws_io)
    return m


def _bn_fold(s1, s2, count, gamma, beta):
    """Fold batch statistics (sum, sum-of-squares) + affine params into a per-channel
    scale/shift:  BN(y) = a*y + c  (training-mode, biased variance)."""
    mean = s1 / count
    var = jnp.maximum(s2 / count - mean * mean, 0.0)
    a = gamma * lax.rsqrt(var + EPS)
    return a, beta - a * mean


# ---------------------------------------------------------------------------
# ResnetBlock forward
# ---------------------------------------------------------------------------
@functools.partial(jax.jit, static_argnums=(2,))
def resnet_block_forward(x_nchw, params, stride):
    assert stride in (1, 2), "only strides 1 and 2 are supported"
    # One layout pass each way (module interface is NCHW); see TODO(synk) at top.
    x = jnp.transpose(x_nchw, (0, 2, 3, 1)).astype(jnp.float32)        # NHWC
    n, h, w, cin = x.shape
    cout = params["w1"].shape[-1]
    has_sc = (stride != 1) or (cin != cout)
    assert h % stride == 0 and w % stride == 0
    ho, wo = h // stride, w // stride
    assert ho >= 2 and wo >= 3 and w >= 3

    f1 = w * cin                     # fused (W, Cin) lane width of the input rows
    woc = wo * cout                  # fused (Wo, Cout) lane width of activations
    ncol1 = 2 * woc if has_sc else woc
    count = float(n * ho * wo)

    # Band matrices are 3/W dense; real ResNet widths need width tiling.
    assert 3 * max(f1 * ncol1, woc * woc) * 2 <= 8 * 1024 * 1024, \
        "band weight matrix too large for this formulation; add width tiling"

    cparams = pltpu.CompilerParams(
        dimension_semantics=("parallel",),          # megacore-shard the batch axis
        vmem_limit_bytes=48 * 1024 * 1024)          # headroom on v7x (64 MiB phys)

    x_f = x.reshape(n, h, f1)

    # ---- stage-1 weights: circular pad + width stride folded in; 1x1 shortcut on
    #      the centre-tap band.  Cast to bf16 once (no per-step casts in-kernel).
    m1 = _build_band_matrix(params["w1"], w, wo, stride, ncol1, 0)
    if has_sc:
        m1 = _add_shortcut_band(m1, params["ws"][0, 0], w, wo, stride, woc)
    m1 = m1.reshape(3 * f1, ncol1).astype(_MM_DTYPE)

    if stride == 1:
        x_in = x_f
        x_spec = pl.BlockSpec((1, h, f1), lambda b: (b, 0, 0))
    else:
        # Free reshape (no HBM copy): each row = fused pair [input row 2r | row 2r+1].
        x_in = x_f.reshape(n, ho, 2 * f1)
        x_spec = pl.BlockSpec((1, ho, 2 * f1), lambda b: (b, 0, 0))

    out_shapes1 = [jax.ShapeDtypeStruct((n, ho, woc), jnp.float32)]
    out_specs1 = [pl.BlockSpec((1, ho, woc), lambda b: (b, 0, 0))]
    if has_sc:
        out_shapes1.append(jax.ShapeDtypeStruct((n, ho, woc), jnp.float32))
        out_specs1.append(pl.BlockSpec((1, ho, woc), lambda b: (b, 0, 0)))
    out_shapes1.append(jax.ShapeDtypeStruct((n, 2, ncol1), jnp.float32))
    out_specs1.append(pl.BlockSpec((1, 2, ncol1), lambda b: (b, 0, 0)))

    res1 = pl.pallas_call(
        functools.partial(_stage1_kernel, stride=stride, ho=ho, f1=f1,
                          woc=woc, has_sc=has_sc),
        grid=(n,),
        in_specs=[x_spec,
                  pl.BlockSpec((3 * f1, ncol1), lambda b: (0, 0))],   # resident weights
        out_specs=tuple(out_specs1),
        out_shape=tuple(out_shapes1),
        compiler_params=cparams,
    )(x_in, m1)

    if has_sc:
        y1_raw, sc_raw, st1 = res1
    else:
        (y1_raw, st1), sc_raw = res1, None

    # Cross-image BN1 statistics (tiny per-channel math in the wrapper).
    s_all = jnp.sum(st1, axis=0)                         # (2, ncol1)
    a1, c1 = _bn_fold(s_all[0, :woc].reshape(wo, cout).sum(0),
                      s_all[1, :woc].reshape(wo, cout).sum(0),
                      count, params["g1"], params["b1"])

    # ---- stage 2: BN1 + ReLU fused into conv2 (stride 1), pre-BN output ----------
    m2 = _build_band_matrix(params["w2"], wo, wo, 1, woc, 0)
    m2 = m2.reshape(3 * woc, woc).astype(_MM_DTYPE)
    a1t = jnp.tile(a1, wo).reshape(1, woc)
    c1t = jnp.tile(c1, wo).reshape(1, woc)

    y2_raw, st2 = pl.pallas_call(
        functools.partial(_stage2_kernel, ho=ho),
        grid=(n,),
        in_specs=[pl.BlockSpec((1, ho, woc), lambda b: (b, 0, 0)),
                  pl.BlockSpec((1, woc), lambda b: (0, 0)),
                  pl.BlockSpec((1, woc), lambda b: (0, 0)),
                  pl.BlockSpec((3 * woc, woc), lambda b: (0, 0))],
        out_specs=(pl.BlockSpec((1, ho, woc), lambda b: (b, 0, 0)),
                   pl.BlockSpec((1, 2, woc), lambda b: (b, 0, 0))),
        out_shape=(jax.ShapeDtypeStruct((n, ho, woc), jnp.float32),
                   jax.ShapeDtypeStruct((n, 2, woc), jnp.float32)),
        compiler_params=cparams,
    )(y1_raw, a1t, c1t, m2)

    s2_all = jnp.sum(st2, axis=0)
    a2, c2 = _bn_fold(s2_all[0].reshape(wo, cout).sum(0),
                      s2_all[1].reshape(wo, cout).sum(0),
                      count, params["g2"], params["b2"])

    if has_sc:
        a_s, c_s = _bn_fold(s_all[0, woc:].reshape(wo, cout).sum(0),
                            s_all[1, woc:].reshape(wo, cout).sum(0),
                            count, params["gs"], params["bs"])
        idn = sc_raw                                  # pre-BN 1x1 shortcut conv
    else:
        a_s = jnp.ones((cout,), jnp.float32)
        c_s = jnp.zeros((cout,), jnp.float32)
        idn = x_f                                     # identity shortcut, same layout

    # ---- stage 3: BN2 + shortcut-BN + residual + ReLU -----------------------------
    out_blk = pl.pallas_call(
        _finalize_kernel,
        grid=(n,),
        in_specs=[pl.BlockSpec((1, ho, woc), lambda b: (b, 0, 0)),
                  pl.BlockSpec((1, ho, woc), lambda b: (b, 0, 0)),
                  pl.BlockSpec((1, woc), lambda b: (0, 0)),
                  pl.BlockSpec((1, woc), lambda b: (0, 0)),
                  pl.BlockSpec((1, woc), lambda b: (0, 0)),
                  pl.BlockSpec((1, woc), lambda b: (0, 0))],
        out_specs=pl.BlockSpec((1, ho, woc), lambda b: (b, 0, 0)),
        out_shape=jax.ShapeDtypeStruct((n, ho, woc), jnp.float32),
        input_output_aliases={0: 0},                  # reuse y2 buffer for the output
        compiler_params=cparams,
    )(y2_raw, idn,
      jnp.tile(a2, wo).reshape(1, woc), jnp.tile(c2, wo).reshape(1, woc),
      jnp.tile(a_s, wo).reshape(1, woc), jnp.tile(c_s, wo).reshape(1, woc))

    out = out_blk.reshape(n, ho, wo, cout)
    return jnp.transpose(out, (0, 3, 1, 2))           # back to NCHW


# ---------------------------------------------------------------------------
# Deterministic synthetic parameters (shapes from ResnetBlock.__init__)
# ---------------------------------------------------------------------------
def init_params(key, cin, cout, stride):
    ks = jax.random.split(key, 9)
    params = dict(
        w1=0.1 * jax.random.normal(ks[0], (3, 3, cin, cout), jnp.float32),   # HWIO
        w2=0.1 * jax.random.normal(ks[1], (3, 3, cout, cout), jnp.float32),
        g1=1.0 + 0.1 * jax.random.normal(ks[2], (cout,), jnp.float32),
        b1=0.1 * jax.random.normal(ks[3], (cout,), jnp.float32),
        g2=1.0 + 0.1 * jax.random.normal(ks[4], (cout,), jnp.float32),
        b2=0.1 * jax.random.normal(ks[5], (cout,), jnp.float32),
    )
    if stride != 1 or cin != cout:
        params.update(
            ws=0.1 * jax.random.normal(ks[6], (1, 1, cin, cout), jnp.float32),
            gs=1.0 + 0.1 * jax.random.normal(ks[7], (cout,), jnp.float32),
            bs=0.1 * jax.random.normal(ks[8], (cout,), jnp.float32),
        )
    return params


# ---------------------------------------------------------------------------
# Plain-JAX reference (lax.conv, all f32) for correctness check
# ---------------------------------------------------------------------------
def reference_forward(x_nchw, params, stride):
    x = jnp.transpose(x_nchw, (0, 2, 3, 1)).astype(jnp.float32)
    dn = ("NHWC", "HWIO", "NHWC")

    def circ_conv3(inp, w_hwio, s):
        xp = jnp.pad(inp, ((0, 0), (1, 1), (1, 1), (0, 0)), mode="wrap")
        return lax.conv_general_dilated(xp, w_hwio, (s, s), "VALID",
                                        dimension_numbers=dn)

    def bn(y, g, b):
        mean = jnp.mean(y, axis=(0, 1, 2), keepdims=True)
        var = jnp.mean((y - mean) ** 2, axis=(0, 1, 2), keepdims=True)
        return (y - mean) * lax.rsqrt(var + EPS) * g.reshape(1, 1, 1, -1) \
            + b.reshape(1, 1, 1, -1)

    h1 = jax.nn.relu(bn(circ_conv3(x, params["w1"], stride),
                        params["g1"], params["b1"]))
    h2 = bn(circ_conv3(h1, params["w2"], 1), params["g2"], params["b2"])
    if "ws" in params:
        idn = bn(lax.conv_general_dilated(x, params["ws"], (stride, stride),
                                          "VALID", dimension_numbers=dn),
                 params["gs"], params["bs"])
    else:
        idn = x
    return jnp.transpose(jax.nn.relu(h2 + idn), (0, 3, 1, 2))


if __name__ == "__main__":
    # Tolerance deliberately widened to 5e-2 max-abs: the kernels use bf16 MXU
    # operands (f32 accumulation) while the reference is pure f32.
    TOL = 5e-2
    key = jax.random.PRNGKey(0)
    kx1, kp1, kx2, kp2 = jax.random.split(key, 4)

    # Config A: stride-2 block with 1x1-conv + BN shortcut (cin != cout).
    N, CIN, H, W, COUT, STRIDE = 2, 4, 16, 16, 8, 2
    x = jax.random.normal(kx1, (N, CIN, H, W), jnp.float32)
    params = init_params(kp1, CIN, COUT, STRIDE)
    out = jax.block_until_ready(resnet_block_forward(x, params, STRIDE))
    assert out.shape == (N, COUT, H // STRIDE, W // STRIDE), out.shape
    err = float(jnp.max(jnp.abs(out - reference_forward(x, params, STRIDE))))
    if err > TOL:
        raise AssertionError(f"Pallas/reference mismatch (shortcut path): {err}")

    # Config B: stride-1 block with identity shortcut (cin == cout).
    N2, C2, H2, W2 = 2, 8, 16, 16
    x2 = jax.random.normal(kx2, (N2, C2, H2, W2), jnp.float32)
    params2 = init_params(kp2, C2, C2, 1)
    out2 = jax.block_until_ready(resnet_block_forward(x2, params2, 1))
    assert out2.shape == (N2, C2, H2, W2), out2.shape
    err2 = float(jnp.max(jnp.abs(out2 - reference_forward(x2, params2, 1))))
    if err2 > TOL:
        raise AssertionError(f"Pallas/reference mismatch (identity path): {err2}")

    print("KERNEL_OK")
</pallas_src>

<mosaic_0001>
module attributes {stable_mosaic.version = 11 : i64} {
  func.func @_stage1_kernel(%arg0: i32, %arg1: memref<1x8x128xf32, #tpu.memory_space<vmem>>, %arg2: memref<192x128xbf16, #tpu.memory_space<vmem>>, %arg3: memref<1x8x64xf32, #tpu.memory_space<vmem>>, %arg4: memref<1x8x64xf32, #tpu.memory_space<vmem>>, %arg5: memref<1x2x128xf32, #tpu.memory_space<vmem>>) attributes {dimension_semantics = [#tpu.dimension_semantics<parallel>], iteration_bounds = array<i64: 2>, scalar_prefetch = 0 : i64, scratch_operands = 0 : i64, tpu.core_type = #tpu.core_type<tc>, window_params = [{transform_indices = @transform_0, window_bounds = array<i64: 1, 8, 128>}, {pipeline_mode = #tpu.pipeline_mode<synchronous>, transform_indices = @transform_1, window_bounds = array<i64: 192, 128>}, {transform_indices = @transform_2, window_bounds = array<i64: 1, 8, 64>}, {transform_indices = @transform_3, window_bounds = array<i64: 1, 8, 64>}, {transform_indices = @transform_4, window_bounds = array<i64: 1, 2, 128>}]} {
    %c0 = arith.constant 0 : index
    %c0_0 = arith.constant 0 : index
    %c0_1 = arith.constant 0 : index
    %0 = vector.load %arg1[%c0, %c0_0, %c0_1] : memref<1x8x128xf32, #tpu.memory_space<vmem>>, vector<1x8x128xf32>
    %1 = vector.shape_cast %0 : vector<1x8x128xf32> to vector<8x128xf32>
    %2 = vector.extract_strided_slice %1 {offsets = [0, 64], sizes = [8, 64], strides = [1, 1]} : vector<8x128xf32> to vector<8x64xf32>
    %3 = vector.extract_strided_slice %2 {offsets = [7, 0], sizes = [1, 64], strides = [1, 1]} : vector<8x64xf32> to vector<1x64xf32>
    %4 = vector.extract_strided_slice %2 {offsets = [0, 0], sizes = [7, 64], strides = [1, 1]} : vector<8x64xf32> to vector<7x64xf32>
    %5 = tpu.concatenate %3, %4 in 0 : vector<1x64xf32>, vector<7x64xf32> -> vector<8x64xf32>
    %6 = tpu.concatenate %5, %1 in 1 : vector<8x64xf32>, vector<8x128xf32> -> vector<8x192xf32>
    %7 = arith.truncf %6 : vector<8x192xf32> to vector<8x192xbf16>
    %c0_2 = arith.constant 0 : index
    %c0_3 = arith.constant 0 : index
    %8 = vector.load %arg2[%c0_2, %c0_3] : memref<192x128xbf16, #tpu.memory_space<vmem>>, vector<192x128xbf16>
    %cst = arith.constant dense<0.000000e+00> : vector<8x128xf32>
    %9 = tpu.matmul %7, %8, %cst {dimension_numbers = #tpu.dot_dimension_numbers<[1], [0], [0], [1], [0, 0, 1, 1], [], []>} : vector<8x192xbf16>, vector<192x128xbf16>, vector<8x128xf32> -> vector<8x128xf32>
    %10 = vector.extract_strided_slice %9 {offsets = [0, 0], sizes = [8, 64], strides = [1, 1]} : vector<8x128xf32> to vector<8x64xf32>
    %c0_4 = arith.constant 0 : index
    %c0_5 = arith.constant 0 : index
    %c0_6 = arith.constant 0 : index
    %11 = vector.load %arg3[%c0_4, %c0_5, %c0_6] : memref<1x8x64xf32, #tpu.memory_space<vmem>>, vector<1x8x64xf32>
    %12 = vector.shape_cast %11 : vector<1x8x64xf32> to vector<8x64xf32>
    %13 = vector.shape_cast %10 : vector<8x64xf32> to vector<1x8x64xf32>
    tpu.vector_store %arg3[%c0_4, %c0_5, %c0_6], %13 {strides = array<i32>} : memref<1x8x64xf32, #tpu.memory_space<vmem>>, vector<1x8x64xf32>,
    %14 = vector.extract_strided_slice %9 {offsets = [0, 64], sizes = [8, 64], strides = [1, 1]} : vector<8x128xf32> to vector<8x64xf32>
    %c0_7 = arith.constant 0 : index
    %c0_8 = arith.constant 0 : index
    %c0_9 = arith.constant 0 : index
    %15 = vector.load %arg4[%c0_7, %c0_8, %c0_9] : memref<1x8x64xf32, #tpu.memory_space<vmem>>, vector<1x8x64xf32>
    %16 = vector.shape_cast %15 : vector<1x8x64xf32> to vector<8x64xf32>
    %17 = vector.shape_cast %14 : vector<8x64xf32> to vector<1x8x64xf32>
    tpu.vector_store %arg4[%c0_7, %c0_8, %c0_9], %17 {strides = array<i32>} : memref<1x8x64xf32, #tpu.memory_space<vmem>>, vector<1x8x64xf32>,
    %cst_10 = arith.constant dense<0.000000e+00> : vector<128xf32>
    %18 = vector.multi_reduction <add>, %9, %cst_10 [0] : vector<8x128xf32> to vector<128xf32>
    %19 = vector.shape_cast %18 : vector<128xf32> to vector<1x128xf32>
    %20 = arith.mulf %9, %9 : vector<8x128xf32>
    %cst_11 = arith.constant dense<0.000000e+00> : vector<128xf32>
    %21 = vector.multi_reduction <add>, %20, %cst_11 [0] : vector<8x128xf32> to vector<128xf32>
    %22 = vector.shape_cast %21 : vector<128xf32> to vector<1x128xf32>
    %23 = tpu.concatenate %19, %22 in 0 : vector<1x128xf32>, vector<1x128xf32> -> vector<2x128xf32>
    %c0_12 = arith.constant 0 : index
    %c0_13 = arith.constant 0 : index
    %c0_14 = arith.constant 0 : index
    %24 = vector.load %arg5[%c0_12, %c0_13, %c0_14] : memref<1x2x128xf32, #tpu.memory_space<vmem>>, vector<1x2x128xf32>
    %25 = vector.shape_cast %24 : vector<1x2x128xf32> to vector<2x128xf32>
    %26 = vector.shape_cast %23 : vector<2x128xf32> to vector<1x2x128xf32>
    tpu.vector_store %arg5[%c0_12, %c0_13, %c0_14], %26 {strides = array<i32>} : memref<1x2x128xf32, #tpu.memory_space<vmem>>, vector<1x2x128xf32>,
    return
  }
  func.func @transform_0(%arg0: i32) -> (i32, i32, i32) {
    %c0_i32 = arith.constant 0 : i32
    %c0_i32_0 = arith.constant 0 : i32
    %c0_i32_1 = arith.constant 0 : i32
    return %arg0, %c0_i32, %c0_i32_0 : i32, i32, i32
  }
  func.func @transform_1(%arg0: i32) -> (i32, i32) {
    %c0_i32 = arith.constant 0 : i32
    %c0_i32_0 = arith.constant 0 : i32
    %c0_i32_1 = arith.constant 0 : i32
    return %c0_i32, %c0_i32_0 : i32, i32
  }
  func.func @transform_2(%arg0: i32) -> (i32, i32, i32) {
    %c0_i32 = arith.constant 0 : i32
    %c0_i32_0 = arith.constant 0 : i32
    %c0_i32_1 = arith.constant 0 : i32
    return %arg0, %c0_i32, %c0_i32_0 : i32, i32, i32
  }
  func.func @transform_3(%arg0: i32) -> (i32, i32, i32) {
    %c0_i32 = arith.constant 0 : i32
    %c0_i32_0 = arith.constant 0 : i32
    %c0_i32_1 = arith.constant 0 : i32
    return %arg0, %c0_i32, %c0_i32_0 : i32, i32, i32
  }
  func.func @transform_4(%arg0: i32) -> (i32, i32, i32) {
    %c0_i32 = arith.constant 0 : i32
    %c0_i32_0 = arith.constant 0 : i32
    %c0_i32_1 = arith.constant 0 : i32
    return %arg0, %c0_i32, %c0_i32_0 : i32, i32, i32
  }
}

module attributes {stable_mosaic.version = 11 : i64} {
  func.func @_stage2_kernel(%arg0: i32, %arg1: memref<1x8x64xf32, #tpu.memory_space<vmem>>, %arg2: memref<1x64xf32, #tpu.memory_space<vmem>>, %arg3: memref<1x64xf32, #tpu.memory_space<vmem>>, %arg4: memref<192x64xbf16, #tpu.memory_space<vmem>>, %arg5: memref<1x8x64xf32, #tpu.memory_space<vmem>>, %arg6: memref<1x2x64xf32, #tpu.memory_space<vmem>>) attributes {dimension_semantics = [#tpu.dimension_semantics<parallel>], iteration_bounds = array<i64: 2>, scalar_prefetch = 0 : i64, scratch_operands = 0 : i64, tpu.core_type = #tpu.core_type<tc>, window_params = [{transform_indices = @transform_0, window_bounds = array<i64: 1, 8, 64>}, {pipeline_mode = #tpu.pipeline_mode<synchronous>, transform_indices = @transform_1, window_bounds = array<i64: 1, 64>}, {pipeline_mode = #tpu.pipeline_mode<synchronous>, transform_indices = @transform_2, window_bounds = array<i64: 1, 64>}, {pipeline_mode = #tpu.pipeline_mode<synchronous>, transform_indices = @transform_3, window_bounds = array<i64: 192, 64>}, {transform_indices = @transform_4, window_bounds = array<i64: 1, 8, 64>}, {transform_indices = @transform_5, window_bounds = array<i64: 1, 2, 64>}]} {
    %c0 = arith.constant 0 : index
    %c0_0 = arith.constant 0 : index
    %0 = vector.load %arg2[%c0, %c0_0] : memref<1x64xf32, #tpu.memory_space<vmem>>, vector<1x64xf32>
    %c0_1 = arith.constant 0 : index
    %c0_2 = arith.constant 0 : index
    %c0_3 = arith.constant 0 : index
    %1 = vector.load %arg1[%c0_1, %c0_2, %c0_3] : memref<1x8x64xf32, #tpu.memory_space<vmem>>, vector<1x8x64xf32>
    %2 = vector.shape_cast %1 : vector<1x8x64xf32> to vector<8x64xf32>
    %3 = vector.broadcast %0 : vector<1x64xf32> to vector<8x64xf32>
    %4 = arith.mulf %3, %2 : vector<8x64xf32>
    %c0_4 = arith.constant 0 : index
    %c0_5 = arith.constant 0 : index
    %5 = vector.load %arg3[%c0_4, %c0_5] : memref<1x64xf32, #tpu.memory_space<vmem>>, vector<1x64xf32>
    %6 = vector.broadcast %5 : vector<1x64xf32> to vector<8x64xf32>
    %7 = arith.addf %4, %6 : vector<8x64xf32>
    %cst = arith.constant 0.000000e+00 : f32
    %8 = vector.broadcast %cst : f32 to vector<8x64xf32>
    %9 = arith.maximumf %7, %8 : vector<8x64xf32>
    %10 = vector.extract_strided_slice %9 {offsets = [7, 0], sizes = [1, 64], strides = [1, 1]} : vector<8x64xf32> to vector<1x64xf32>
    %11 = vector.extract_strided_slice %9 {offsets = [0, 0], sizes = [7, 64], strides = [1, 1]} : vector<8x64xf32> to vector<7x64xf32>
    %12 = tpu.concatenate %10, %11 in 0 : vector<1x64xf32>, vector<7x64xf32> -> vector<8x64xf32>
    %13 = vector.extract_strided_slice %9 {offsets = [1, 0], sizes = [7, 64], strides = [1, 1]} : vector<8x64xf32> to vector<7x64xf32>
    %14 = vector.extract_strided_slice %9 {offsets = [0, 0], sizes = [1, 64], strides = [1, 1]} : vector<8x64xf32> to vector<1x64xf32>
    %15 = tpu.concatenate %13, %14 in 0 : vector<7x64xf32>, vector<1x64xf32> -> vector<8x64xf32>
    %16 = tpu.concatenate %12, %9, %15 in 1 : vector<8x64xf32>, vector<8x64xf32>, vector<8x64xf32> -> vector<8x192xf32>
    %17 = arith.truncf %16 : vector<8x192xf32> to vector<8x192xbf16>
    %c0_6 = arith.constant 0 : index
    %c0_7 = arith.constant 0 : index
    %18 = vector.load %arg4[%c0_6, %c0_7] : memref<192x64xbf16, #tpu.memory_space<vmem>>, vector<192x64xbf16>
    %cst_8 = arith.constant dense<0.000000e+00> : vector<8x64xf32>
    %19 = tpu.matmul %17, %18, %cst_8 {dimension_numbers = #tpu.dot_dimension_numbers<[1], [0], [0], [1], [0, 0, 1, 1], [], []>} : vector<8x192xbf16>, vector<192x64xbf16>, vector<8x64xf32> -> vector<8x64xf32>
    %c0_9 = arith.constant 0 : index
    %c0_10 = arith.constant 0 : index
    %c0_11 = arith.constant 0 : index
    %20 = vector.load %arg5[%c0_9, %c0_10, %c0_11] : memref<1x8x64xf32, #tpu.memory_space<vmem>>, vector<1x8x64xf32>
    %21 = vector.shape_cast %20 : vector<1x8x64xf32> to vector<8x64xf32>
    %22 = vector.shape_cast %19 : vector<8x64xf32> to vector<1x8x64xf32>
    tpu.vector_store %arg5[%c0_9, %c0_10, %c0_11], %22 {strides = array<i32>} : memref<1x8x64xf32, #tpu.memory_space<vmem>>, vector<1x8x64xf32>,
    %cst_12 = arith.constant dense<0.000000e+00> : vector<64xf32>
    %23 = vector.multi_reduction <add>, %19, %cst_12 [0] : vector<8x64xf32> to vector<64xf32>
    %24 = vector.shape_cast %23 : vector<64xf32> to vector<1x64xf32>
    %25 = arith.mulf %19, %19 : vector<8x64xf32>
    %cst_13 = arith.constant dense<0.000000e+00> : vector<64xf32>
    %26 = vector.multi_reduction <add>, %25, %cst_13 [0] : vector<8x64xf32> to vector<64xf32>
    %27 = vector.shape_cast %26 : vector<64xf32> to vector<1x64xf32>
    %28 = tpu.concatenate %24, %27 in 0 : vector<1x64xf32>, vector<1x64xf32> -> vector<2x64xf32>
    %c0_14 = arith.constant 0 : index
    %c0_15 = arith.constant 0 : index
    %c0_16 = arith.constant 0 : index
    %29 = vector.load %arg6[%c0_14, %c0_15, %c0_16] : memref<1x2x64xf32, #tpu.memory_space<vmem>>, vector<1x2x64xf32>
    %30 = vector.shape_cast %29 : vector<1x2x64xf32> to vector<2x64xf32>
    %31 = vector.shape_cast %28 : vector<2x64xf32> to vector<1x2x64xf32>
    tpu.vector_store %arg6[%c0_14, %c0_15, %c0_16], %31 {strides = array<i32>} : memref<1x2x64xf32, #tpu.memory_space<vmem>>, vector<1x2x64xf32>,
    return
  }
  func.func @transform_0(%arg0: i32) -> (i32, i32, i32) {
    %c0_i32 = arith.constant 0 : i32
    %c0_i32_0 = arith.constant 0 : i32
    %c0_i32_1 = arith.constant 0 : i32
    return %arg0, %c0_i32, %c0_i32_0 : i32, i32, i32
  }
  func.func @transform_1(%arg0: i32) -> (i32, i32) {
    %c0_i32 = arith.constant 0 : i32
    %c0_i32_0 = arith.constant 0 : i32
    %c0_i32_1 = arith.constant 0 : i32
    return %c0_i32, %c0_i32_0 : i32, i32
  }
  func.func @transform_2(%arg0: i32) -> (i32, i32) {
    %c0_i32 = arith.constant 0 : i32
    %c0_i32_0 = arith.constant 0 : i32
    %c0_i32_1 = arith.constant 0 : i32
    return %c0_i32, %c0_i32_0 : i32, i32
  }
  func.func @transform_3(%arg0: i32) -> (i32, i32) {
    %c0_i32 = arith.constant 0 : i32
    %c0_i32_0 = arith.constant 0 : i32
    %c0_i32_1 = arith.constant 0 : i32
    return %c0_i32, %c0_i32_0 : i32, i32
  }
  func.func @transform_4(%arg0: i32) -> (i32, i32, i32) {
    %c0_i32 = arith.constant 0 : i32
    %c0_i32_0 = arith.constant 0 : i32
    %c0_i32_1 = arith.constant 0 : i32
    return %arg0, %c0_i32, %c0_i32_0 : i32, i32, i32
  }
  func.func @transform_5(%arg0: i32) -> (i32, i32, i32) {
    %c0_i32 = arith.constant 0 : i32
    %c0_i32_0 = arith.constant 0 : i32
    %c0_i32_1 = arith.constant 0 : i32
    return %arg0, %c0_i32, %c0_i32_0 : i32, i32, i32
  }
}

module attributes {stable_mosaic.version = 11 : i64} {
  func.func @_finalize_kernel(%arg0: i32, %arg1: memref<1x8x64xf32, #tpu.memory_space<vmem>>, %arg2: memref<1x8x64xf32, #tpu.memory_space<vmem>>, %arg3: memref<1x64xf32, #tpu.memory_space<vmem>>, %arg4: memref<1x64xf32, #tpu.memory_space<vmem>>, %arg5: memref<1x64xf32, #tpu.memory_space<vmem>>, %arg6: memref<1x64xf32, #tpu.memory_space<vmem>>, %arg7: memref<1x8x64xf32, #tpu.memory_space<vmem>>) attributes {dimension_semantics = [#tpu.dimension_semantics<parallel>], iteration_bounds = array<i64: 2>, scalar_prefetch = 0 : i64, scratch_operands = 0 : i64, tpu.core_type = #tpu.core_type<tc>, window_params = [{transform_indices = @transform_0, window_bounds = array<i64: 1, 8, 64>}, {transform_indices = @transform_1, window_bounds = array<i64: 1, 8, 64>}, {pipeline_mode = #tpu.pipeline_mode<synchronous>, transform_indices = @transform_2, window_bounds = array<i64: 1, 64>}, {pipeline_mode = #tpu.pipeline_mode<synchronous>, transform_indices = @transform_3, window_bounds = array<i64: 1, 64>}, {pipeline_mode = #tpu.pipeline_mode<synchronous>, transform_indices = @transform_4, window_bounds = array<i64: 1, 64>}, {pipeline_mode = #tpu.pipeline_mode<synchronous>, transform_indices = @transform_5, window_bounds = array<i64: 1, 64>}, {transform_indices = @transform_6, window_bounds = array<i64: 1, 8, 64>}]} {
    %c0 = arith.constant 0 : index
    %c0_0 = arith.constant 0 : index
    %0 = vector.load %arg3[%c0, %c0_0] : memref<1x64xf32, #tpu.memory_space<vmem>>, vector<1x64xf32>
    %c0_1 = arith.constant 0 : index
    %c0_2 = arith.constant 0 : index
    %c0_3 = arith.constant 0 : index
    %1 = vector.load %arg1[%c0_1, %c0_2, %c0_3] : memref<1x8x64xf32, #tpu.memory_space<vmem>>, vector<1x8x64xf32>
    %2 = vector.shape_cast %1 : vector<1x8x64xf32> to vector<8x64xf32>
    %3 = vector.broadcast %0 : vector<1x64xf32> to vector<8x64xf32>
    %4 = arith.mulf %3, %2 : vector<8x64xf32>
    %c0_4 = arith.constant 0 : index
    %c0_5 = arith.constant 0 : index
    %5 = vector.load %arg4[%c0_4, %c0_5] : memref<1x64xf32, #tpu.memory_space<vmem>>, vector<1x64xf32>
    %6 = vector.broadcast %5 : vector<1x64xf32> to vector<8x64xf32>
    %7 = arith.addf %4, %6 : vector<8x64xf32>
    %c0_6 = arith.constant 0 : index
    %c0_7 = arith.constant 0 : index
    %8 = vector.load %arg5[%c0_6, %c0_7] : memref<1x64xf32, #tpu.memory_space<vmem>>, vector<1x64xf32>
    %c0_8 = arith.constant 0 : index
    %c0_9 = arith.constant 0 : index
    %c0_10 = arith.constant 0 : index
    %9 = vector.load %arg2[%c0_8, %c0_9, %c0_10] : memref<1x8x64xf32, #tpu.memory_space<vmem>>, vector<1x8x64xf32>
    %10 = vector.shape_cast %9 : vector<1x8x64xf32> to vector<8x64xf32>
    %11 = vector.broadcast %8 : vector<1x64xf32> to vector<8x64xf32>
    %12 = arith.mulf %11, %10 : vector<8x64xf32>
    %13 = arith.addf %7, %12 : vector<8x64xf32>
    %c0_11 = arith.constant 0 : index
    %c0_12 = arith.constant 0 : index
    %14 = vector.load %arg6[%c0_11, %c0_12] : memref<1x64xf32, #tpu.memory_space<vmem>>, vector<1x64xf32>
    %15 = vector.broadcast %14 : vector<1x64xf32> to vector<8x64xf32>
    %16 = arith.addf %13, %15 : vector<8x64xf32>
    %cst = arith.constant 0.000000e+00 : f32
    %17 = vector.broadcast %cst : f32 to vector<8x64xf32>
    %18 = arith.maximumf %16, %17 : vector<8x64xf32>
    %c0_13 = arith.constant 0 : index
    %c0_14 = arith.constant 0 : index
    %c0_15 = arith.constant 0 : index
    %19 = vector.load %arg7[%c0_13, %c0_14, %c0_15] : memref<1x8x64xf32, #tpu.memory_space<vmem>>, vector<1x8x64xf32>
    %20 = vector.shape_cast %19 : vector<1x8x64xf32> to vector<8x64xf32>
    %21 = vector.shape_cast %18 : vector<8x64xf32> to vector<1x8x64xf32>
    tpu.vector_store %arg7[%c0_13, %c0_14, %c0_15], %21 {strides = array<i32>} : memref<1x8x64xf32, #tpu.memory_space<vmem>>, vector<1x8x64xf32>,
    return
  }
  func.func @transform_0(%arg0: i32) -> (i32, i32, i32) {
    %c0_i32 = arith.constant 0 : i32
    %c0_i32_0 = arith.constant 0 : i32
    %c0_i32_1 = arith.constant 0 : i32
    return %arg0, %c0_i32, %c0_i32_0 : i32, i32, i32
  }
  func.func @transform_1(%arg0: i32) -> (i32, i32, i32) {
    %c0_i32 = arith.constant 0 : i32
    %c0_i32_0 = arith.constant 0 : i32
    %c0_i32_1 = arith.constant 0 : i32
    return %arg0, %c0_i32, %c0_i32_0 : i32, i32, i32
  }
  func.func @transform_2(%arg0: i32) -> (i32, i32) {
    %c0_i32 = arith.constant 0 : i32
    %c0_i32_0 = arith.constant 0 : i32
    %c0_i32_1 = arith.constant 0 : i32
    return %c0_i32, %c0_i32_0 : i32, i32
  }
  func.func @transform_3(%arg0: i32) -> (i32, i32) {
    %c0_i32 = arith.constant 0 : i32
    %c0_i32_0 = arith.constant 0 : i32
    %c0_i32_1 = arith.constant 0 : i32
    return %c0_i32, %c0_i32_0 : i32, i32
  }
  func.func @transform_4(%arg0: i32) -> (i32, i32) {
    %c0_i32 = arith.constant 0 : i32
    %c0_i32_0 = arith.constant 0 : i32
    %c0_i32_1 = arith.constant 0 : i32
    return %c0_i32, %c0_i32_0 : i32, i32
  }
  func.func @transform_5(%arg0: i32) -> (i32, i32) {
    %c0_i32 = arith.constant 0 : i32
    %c0_i32_0 = arith.constant 0 : i32
    %c0_i32_1 = arith.constant 0 : i32
    return %c0_i32, %c0_i32_0 : i32, i32
  }
  func.func @transform_6(%arg0: i32) -> (i32, i32, i32) {
    %c0_i32 = arith.constant 0 : i32
    %c0_i32_0 = arith.constant 0 : i32
    %c0_i32_1 = arith.constant 0 : i32
    return %arg0, %c0_i32, %c0_i32_0 : i32, i32, i32
  }
}

</mosaic_0001>

<llo_original>
// kernel: squeeze.80
$region0: #{squeeze.80}
  %s0 = inlined_call_operand.vmem [shape: f32[64], index: 0, kind: input, shape index: {}]
  %s1 = inlined_call_operand.vmem [shape: f32[8,8], index: 1, kind: output, shape index: {}]
  $region1: #{squeeze.80} parent=0
    #allocation0 [shape = 'u8[4096]{0}', space=vmem, size = 0x1000, scoped, tag = 'scoped mem for input reshape']
    %s3 = sshllo.u32 0, 1
    %v4 = vld [vmem:[%s0] sm:%s3]
    %5 = vst [vmem:[#allocation0] sm:%s3] %v4
    %v6 = vld [vmem:[#allocation0] sm:$0x1]
    %vm7 = vcmask 64512
    %8 = vst.msk [vmem:[%s1] sm:$0x1] %vm7, %v6
    %v9 = vld [vmem:[#allocation0] sm:$0x1]
    %10 = vrot.lane.b32.xlu0 %v9, 120
    %v11 = vpop.permute.xlu0 %10
    %vm12 = vcmask 64512
    %s13 = scalar_lea.vmem %s1, 1
    %14 = vst.msk [vmem:[%s13] sm:$0x1] %vm12, %v11
    %v15 = vld [vmem:[#allocation0] sm:$0x1]
    %16 = vrot.lane.b32.xlu0 %v15, 112
    %v17 = vpop.permute.xlu0 %16
    %vm18 = vcmask 64512
    %s19 = scalar_lea.vmem %s1, 2
    %20 = vst.msk [vmem:[%s19] sm:$0x1] %vm18, %v17
    %v21 = vld [vmem:[#allocation0] sm:$0x1]
    %22 = vrot.lane.b32.xlu0 %v21, 104
    %v23 = vpop.permute.xlu0 %22
    %vm24 = vcmask 64512
    %s25 = scalar_lea.vmem %s1, 3
    %26 = vst.msk [vmem:[%s25] sm:$0x1] %vm24, %v23
    %v27 = vld [vmem:[#allocation0] sm:$0x1]
    %28 = vrot.lane.b32.xlu0 %v27, 96
    %v29 = vpop.permute.xlu0 %28
    %vm30 = vcmask 64512
    %s31 = scalar_lea.vmem %s1, 4
    %32 = vst.msk [vmem:[%s31] sm:$0x1] %vm30, %v29
    %v33 = vld [vmem:[#allocation0] sm:$0x1]
    %34 = vrot.lane.b32.xlu0 %v33, 88
    %v35 = vpop.permute.xlu0 %34
    %vm36 = vcmask 64512
    %s37 = scalar_lea.vmem %s1, 5
    %38 = vst.msk [vmem:[%s37] sm:$0x1] %vm36, %v35
    %v39 = vld [vmem:[#allocation0] sm:$0x1]
    %40 = vrot.lane.b32.xlu0 %v39, 80
    %v41 = vpop.permute.xlu0 %40
    %vm42 = vcmask 64512
    %s43 = scalar_lea.vmem %s1, 6
    %44 = vst.msk [vmem:[%s43] sm:$0x1] %vm42, %v41
    %v45 = vld [vmem:[#allocation0] sm:$0x1]
    %46 = vrot.lane.b32.xlu0 %v45, 72
    %v47 = vpop.permute.xlu0 %46
    %vm48 = vcmask 64512
    %s49 = scalar_lea.vmem %s1, 7
    %50 = vst.msk [vmem:[%s49] sm:$0x1] %vm48, %v47

// kernel: tile.33
$region0: #{tile.33}
  #allocation0 [shape = 's32[1]{0}', space=sflag, size = 0x4, scoped, tag = 'scoped memory for tile.33']
  %s0 = inlined_call_operand.vmem [shape: f32[8], index: 0, kind: input, shape index: {}]
  %s1 = inlined_call_operand.vmem [shape: f32[8,8], index: 1, kind: output, shape index: {}]
  // Predicated region
  $region2: #{tile.33} parent=0 // pred_check
    _
  $region3: #{tile.33} parent=0 // pred_check_branch
    %3 = sbr.rel (0) target = $region5
  $region4: #{tile.33} parent=0 // pred_region
    _
  $region5: #{tile.33} parent=0 // pred_fallthru
    _
  %v4 = vld [vmem:[%s0] ss:$0 sm:$0xff]
  %5 = vst [vmem:[%s1] sm:$0xff] %v4

// kernel: tile.34
$region0: #{tile.34}
  %s0 = inlined_call_operand.vmem [shape: f32[8,8], index: 0, kind: input, shape index: {}]
  %s1 = inlined_call_operand.vmem [shape: f32[1,64], index: 1, kind: output, shape index: {}]
  $region1: #{tile.34} parent=0
    #allocation0 [shape = 'u8[4096]{0}', space=vmem, size = 0x1000, scoped, tag = 'scoped mem for output reshape']
    %v2 = vld [vmem:[%s0] sm:$0x1]
    %vm3 = vcmask 64512
    %4 = vst.msk [vmem:[#allocation0] sm:$0x1] %vm3, %v2
    %s5 = scalar_lea.vmem %s0, 7
    %v6 = vld [vmem:[%s5] sm:$0x1]
    %7 = vrot.lane.b32.xlu0 %v6, 56
    %v8 = vpop.permute.xlu0 %7
    %vm9 = vcmask 523712
    %10 = vst.msk [vmem:[#allocation0] sm:$0x1] %vm9, %v8
    %s11 = scalar_lea.vmem %s0, 6
    %v12 = vld [vmem:[%s11] sm:$0x1]
    %13 = vrot.lane.b32.xlu0 %v12, 48
    %v14 = vpop.permute.xlu0 %13
    %vm15 = vcmask 458112
    %16 = vst.msk [vmem:[#allocation0] sm:$0x1] %vm15, %v14
    %s17 = scalar_lea.vmem %s0, 5
    %v18 = vld [vmem:[%s17] sm:$0x1]
    %19 = vrot.lane.b32.xlu0 %v18, 40
    %v20 = vpop.permute.xlu0 %19
    %vm21 = vcmask 392512
    %22 = vst.msk [vmem:[#allocation0] sm:$0x1] %vm21, %v20
    %s23 = scalar_lea.vmem %s0, 4
    %v24 = vld [vmem:[%s23] sm:$0x1]
    %25 = vrot.lane.b32.xlu0 %v24, 32
    %v26 = vpop.permute.xlu0 %25
    %vm27 = vcmask 326912
    %28 = vst.msk [vmem:[#allocation0] sm:$0x1] %vm27, %v26
    %s29 = scalar_lea.vmem %s0, 3
    %v30 = vld [vmem:[%s29] sm:$0x1]
    %31 = vrot.lane.b32.xlu0 %v30, 24
    %v32 = vpop.permute.xlu0 %31
    %vm33 = vcmask 261312
    %34 = vst.msk [vmem:[#allocation0] sm:$0x1] %vm33, %v32
    %s35 = scalar_lea.vmem %s0, 2
    %v36 = vld [vmem:[%s35] sm:$0x1]
    %37 = vrot.lane.b32.xlu0 %v36, 16
    %v38 = vpop.permute.xlu0 %37
    %vm39 = vcmask 195712
    %40 = vst.msk [vmem:[#allocation0] sm:$0x1] %vm39, %v38
    %s41 = scalar_lea.vmem %s0, 1
    %v42 = vld [vmem:[%s41] sm:$0x1]
    %43 = vrot.lane.b32.xlu0 %v42, 8
    %v44 = vpop.permute.xlu0 %43
    %vm45 = vcmask 130112
    %46 = vst.msk [vmem:[#allocation0] sm:$0x1] %vm45, %v44
    %s48 = sshllo.u32 0, 1
    %v50 = vld [vmem:[#allocation0] sm:%s48]
    %s51 = sshllo.u32 0, 1
    %52 = vst [vmem:[%s1] sm:%s51] %v50

// kernel: resnet_block_forward.3
$region0: #{resnet_block_forward.3}
  #allocation0 [shape = 'u32[]', space=smem, size = 0x4, offset = 0x4, fixed_abs, tag = 'smem constant byte address 0x4 - core index']
  #allocation1 [shape = 'u32[144,128]{1,0:T(1,128)}', space=vmem, size = 0x12000, scoped, tag = 'internal scratch']
  %s0 = inlined_call_operand.vmem [shape: f32[2,8,128], index: 0, kind: input, shape index: {}]
  %s1 = inlined_call_operand.vmem [shape: bf16[192,128], index: 1, kind: input, shape index: {}]
  %s2 = inlined_call_operand.vmem [shape: f32[2,8,64], index: 2, kind: output, shape index: {0}]
  %s3 = inlined_call_operand.vmem [shape: f32[2,8,64], index: 3, kind: output, shape index: {1}]
  %s4 = inlined_call_operand.vmem [shape: f32[2,2,128], index: 4, kind: output, shape index: {2}]
  %5 = xla_tuple %s2, %s3, %s4
  %s6 = sld [smem:[#allocation0]]
  $region57: #{resnet_block_forward.3} parent=0
    _
  %s8 = ssub.s32 1, %s6
  %s9 = scalar_select 0, %s8, %s6
  loop: start=0, step=1, limit=4
  $region2: #{resnet_block_forward.3} parent=0 // loop_pre_header
    _
  $region3: #{resnet_block_forward.3} parent=0 // loop_header
    %s11 = sphi 0, %s15
    %p12 = scmp.ge.s32.totalorder %s11, 4
    %s21 = sphi 0, %s23
    %s24 = sphi 0, %s21
    %s25 = sphi 0, %s24
    %s41 = sphi 0, %s25
    %s45 = sphi 0, %s45
    %s47 = sphi 0, %s45
    %s48 = sphi 0, %s47
    %s62 = sphi 0, %s48
    %s68 = sphi 0, %s70
    %s71 = sphi 0, %s68
    %s72 = sphi 0, %s71
    %s88 = sphi 0, %s72
    %s94 = sphi 0, %s96
    %s97 = sphi 0, %s94
    %s98 = sphi 0, %s97
    %s114 = sphi 0, %s98
    %s120 = sphi 0, %s122
    %s123 = sphi 0, %s120
    %s124 = sphi 0, %s123
    %s140 = sphi 0, %s124
  $region4: #{resnet_block_forward.3} parent=0 // loop_header_branch
    %14 = sbr.rel (%p12) target = $region8
  $region5: #{resnet_block_forward.3} parent=0 // loop_body
    %s16 = ssub.s32 %s11, 1
    %s17 = ssub.s32 %s11, 2
    %s18 = sadd.s32 %s11, 1
    %s19 = ssub.s32 %s11, %s18
    %p20 = scmp.eq.s32.totalorder %s19, 0
    %s22 = sadd.s32 %s21, 1
    %s23 = scalar_select %p20, %s21, %s22
    %p26 = pneg %p20
    %p27 = scmp.eq.s32.totalorder %s11, 1
    %p28 = por %p26, %p27
    %p29 = scmp.ne.s32.totalorder %s21, %s24
    %p30 = scmp.eq.s32.totalorder %s11, 0
    %p31 = por %p29, %p30
    %p32 = scmp.ne.s32.totalorder %s21, %s24
    %p33 = scmp.eq.s32.totalorder %s16, 1
    %p34 = por %p32, %p33
    %p35 = scmp.ne.s32.totalorder %s24, %s25
    %p36 = scmp.eq.s32.totalorder %s16, 0
    %p37 = por %p35, %p36
    %p38 = scmp.ne.s32.totalorder %s24, %s25
    %p39 = scmp.eq.s32.totalorder %s17, 1
    %p40 = por %p38, %p39
    %p42 = scmp.ne.s32.totalorder %s25, %s41
    %p43 = scmp.eq.s32.totalorder %s17, 0
    %p44 = por %p42, %p43
    %s46 = sadd.s32 %s45, 1
    %p49 = scmp.eq.s32.totalorder %s11, 1
    %p50 = scmp.ne.s32.totalorder %s45, %s47
    %p51 = scmp.eq.s32.totalorder %s11, 0
    %p52 = por %p50, %p51
    %p53 = scmp.ne.s32.totalorder %s45, %s47
    %p54 = scmp.eq.s32.totalorder %s16, 1
    %p55 = por %p53, %p54
    %p56 = scmp.ne.s32.totalorder %s47, %s48
    %p57 = scmp.eq.s32.totalorder %s16, 0
    %p58 = por %p56, %p57
    %p59 = scmp.ne.s32.totalorder %s47, %s48
    %p60 = scmp.eq.s32.totalorder %s17, 1
    %p61 = por %p59, %p60
    %p63 = scmp.ne.s32.totalorder %s48, %s62
    %p64 = scmp.eq.s32.totalorder %s17, 0
    %p65 = por %p63, %p64
    %s66 = ssub.s32 %s11, %s18
    %p67 = scmp.eq.s32.totalorder %s66, 0
    %s69 = sadd.s32 %s68, 1
    %s70 = scalar_select %p67, %s68, %s69
    %p73 = pneg %p67
    %p74 = scmp.eq.s32.totalorder %s11, 1
    %p75 = por %p73, %p74
    %p76 = scmp.ne.s32.totalorder %s68, %s71
    %p77 = scmp.eq.s32.totalorder %s11, 0
    %p78 = por %p76, %p77
    %p79 = scmp.ne.s32.totalorder %s68, %s71
    %p80 = scmp.eq.s32.totalorder %s16, 1
    %p81 = por %p79, %p80
    %p82 = scmp.ne.s32.totalorder %s71, %s72
    %p83 = scmp.eq.s32.totalorder %s16, 0
    %p84 = por %p82, %p83
    %p85 = scmp.ne.s32.totalorder %s71, %s72
    %p86 = scmp.eq.s32.totalorder %s17, 1
    %p87 = por %p85, %p86
    %p89 = scmp.ne.s32.totalorder %s72, %s88
    %p90 = scmp.eq.s32.totalorder %s17, 0
    %p91 = por %p89, %p90
    %s92 = ssub.s32 %s11, %s18
    %p93 = scmp.eq.s32.totalorder %s92, 0
    %s95 = sadd.s32 %s94, 1
    %s96 = scalar_select %p93, %s94, %s95
    %p99 = pneg %p93
    %p100 = scmp.eq.s32.totalorder %s11, 1
    %p101 = por %p99, %p100
    %p102 = scmp.ne.s32.totalorder %s94, %s97
    %p103 = scmp.eq.s32.totalorder %s11, 0
    %p104 = por %p102, %p103
    %p105 = scmp.ne.s32.totalorder %s94, %s97
    %p106 = scmp.eq.s32.totalorder %s16, 1
    %p107 = por %p105, %p106
    %p108 = scmp.ne.s32.totalorder %s97, %s98
    %p109 = scmp.eq.s32.totalorder %s16, 0
    %p110 = por %p108, %p109
    %p111 = scmp.ne.s32.totalorder %s97, %s98
    %p112 = scmp.eq.s32.totalorder %s17, 1
    %p113 = por %p111, %p112
    %p115 = scmp.ne.s32.totalorder %s98, %s114
    %p116 = scmp.eq.s32.totalorder %s17, 0
    %p117 = por %p115, %p116
    %s118 = ssub.s32 %s11, %s18
    %p119 = scmp.eq.s32.totalorder %s118, 0
    %s121 = sadd.s32 %s120, 1
    %s122 = scalar_select %p119, %s120, %s121
    %p125 = pneg %p119
    %p126 = scmp.eq.s32.totalorder %s11, 1
    %p127 = por %p125, %p126
    %p128 = scmp.ne.s32.totalorder %s120, %s123
    %p129 = scmp.eq.s32.totalorder %s11, 0
    %p130 = por %p128, %p129
    %p131 = scmp.ne.s32.totalorder %s120, %s123
    %p132 = scmp.eq.s32.totalorder %s16, 1
    %p133 = por %p131, %p132
    %p134 = scmp.ne.s32.totalorder %s123, %s124
    %p135 = scmp.eq.s32.totalorder %s16, 0
    %p136 = por %p134, %p135
    %p137 = scmp.ne.s32.totalorder %s123, %s124
    %p138 = scmp.eq.s32.totalorder %s17, 1
    %p139 = por %p137, %p138
    %p141 = scmp.ne.s32.totalorder %s124, %s140
    %p142 = scmp.eq.s32.totalorder %s17, 0
    %p143 = por %p141, %p142
    %p144 = scmp.le.s32.totalorder 1, %s11
    %p145 = scmp.lt.s32.totalorder %s11, 3
    %p146 = pnand %p144, %p145
    %p147 = pneg %p146
    // Predicated region
    $region9: #{resnet_block_forward.3} parent=5 // pred_check
      _
    $region10: #{resnet_block_forward.3} parent=5 // pred_check_branch
      %149 = sbr.rel (%p146) target = $region12
    $region11: #{resnet_block_forward.3} parent=5 // pred_region
      %s150 = ssub.s32 %s11, 1
      // Predicated region
      $region13: #{resnet_block_forward.3} parent=11 // pred_check
        %p151 = pneg %p58
      $region14: #{resnet_block_forward.3} parent=11 // pred_check_branch
        %153 = sbr.rel (%p151) target = $region16
      $region15: #{resnet_block_forward.3} parent=11 // pred_region
        _
      $region16: #{resnet_block_forward.3} parent=11 // pred_fallthru
        _
    $region12: #{resnet_block_forward.3} parent=5 // pred_fallthru
      _
    %p154 = scmp.lt.s32.totalorder %s11, 2
    // Predicated region
    $region17: #{resnet_block_forward.3} parent=5 // pred_check
      %p155 = pneg %p154
    $region18: #{resnet_block_forward.3} parent=5 // pred_check_branch
      %157 = sbr.rel (%p155) target = $region20
    $region19: #{resnet_block_forward.3} parent=5 // pred_region
      // Predicated region
      $region21: #{resnet_block_forward.3} parent=19 // pred_check
        %p158 = pneg %p31
      $region22: #{resnet_block_forward.3} parent=19 // pred_check_branch
        %160 = sbr.rel (%p158) target = $region24
      $region23: #{resnet_block_forward.3} parent=19 // pred_region
        %p161 = scmp.lt.s32.totalorder %s11, 1
        %s162 = scalar_select %p161, %s11, 1
        %s163 = smul.addr %s162, 8
        %s164 = scalar_lea.vmem %s0, %s163
      $region24: #{resnet_block_forward.3} parent=19 // pred_fallthru
        _
    $region20: #{resnet_block_forward.3} parent=5 // pred_fallthru
      _
    %p165 = scmp.le.s32.totalorder 1, %s11
    %p166 = scmp.lt.s32.totalorder %s11, 3
    %p167 = pnand %p165, %p166
    %p168 = pneg %p167
    // Predicated region
    $region25: #{resnet_block_forward.3} parent=5 // pred_check
      _
    $region26: #{resnet_block_forward.3} parent=5 // pred_check_branch
      %170 = sbr.rel (%p167) target = $region28
    $region27: #{resnet_block_forward.3} parent=5 // pred_region
      %s171 = ssub.s32 %s11, 1
      %p172 = scmp.lt.s32.totalorder %s16, 1
      %s173 = scalar_select %p172, %s16, 1
      %s174 = smul.addr %s173, 8
      %s175 = scalar_lea.vmem %s0, %s174
      %p176 = pneg %p37
      %p177 = pneg %p34
      %p178 = pneg %p58
      %p179 = pneg %p55
      %p180 = pneg %p84
      %p181 = pneg %p81
      %p182 = scmp.lt.s32.totalorder %s16, 1
      %s183 = scalar_select %p182, %s16, 1
      %s184 = smul.addr %s183, 8
      %s185 = scalar_lea.vmem %s2, %s184
      %p186 = pneg %p110
      %p187 = pneg %p107
      %p188 = scmp.lt.s32.totalorder %s16, 1
      %s189 = scalar_select %p188, %s16, 1
      %s190 = smul.addr %s189, 8
      %s191 = scalar_lea.vmem %s3, %s190
      %p192 = pneg %p136
      %p193 = pneg %p133
      %p194 = scmp.lt.s32.totalorder %s16, 1
      %s195 = scalar_select %p194, %s16, 1
      %s196 = smul.addr %s195, 2
      %s197 = scalar_lea.vmem %s4, %s196
      %p198 = scmp.lt.s32.totalorder %s16, 1
      %s199 = scalar_select %p198, %s16, 1
      %s200 = smul.addr %s199, 8
      %s201 = scalar_lea.vmem %s0, %s200
      %p202 = scmp.lt.s32.totalorder %s16, 1
      %s203 = scalar_select %p202, %s16, 1
      %s204 = smul.addr %s203, 8
      %s205 = scalar_lea.vmem %s2, %s204
      %p206 = scmp.lt.s32.totalorder %s16, 1
      %s207 = scalar_select %p206, %s16, 1
      %s208 = smul.addr %s207, 8
      %s209 = scalar_lea.vmem %s3, %s208
      %p210 = scmp.lt.s32.totalorder %s16, 1
      %s211 = scalar_select %p210, %s16, 1
      %s212 = smul.addr %s211, 2
      %s213 = scalar_lea.vmem %s4, %s212
      %v215 = vld [vmem:[%s201] sm:$0xff]
      %v217 = vrot.slane %v215, 7
      %vm219 = vcmask 1040384
      %v220 = vsel %vm219, %v217, %v217
      %222 = vrot.lane.b32.xlu0 %v220, 64
      %v223 = vpop.permute.xlu0 %222
      %225 = vrot.lane.b32.xlu0 %v215, 64
      %v226 = vpop.permute.xlu0 %225
      %vm228 = vcmask 523264
      %v229 = vsel %vm228, %v223, %v226
      %v230 = vpack.c.bf16 %v229, %v229
      %v231 = vpack.c.bf16 %v226, %v226
      %v232 = vld [vmem:[%s1] sm:$0xf]
      %v233 = vld [vmem:[%s1 + $0x4] sm:$0xf]
      %v234 = vld [vmem:[%s1 + $0x8] sm:$0xf]
      %v235 = vld [vmem:[%s1 + $0xc] sm:$0xf]
      %v236 = vld [vmem:[%s1 + $0x10] sm:$0xf]
      %v237 = vld [vmem:[%s1 + $0x14] sm:$0xf]
      %v238 = vld [vmem:[%s1 + $0x18] sm:$0xf]
      %v239 = vld [vmem:[%s1 + $0x1c] sm:$0xf]
      %v240 = vld [vmem:[%s1 + $0x20] sm:$0xf]
      %v241 = vld [vmem:[%s1 + $0x24] sm:$0xf]
      %v242 = vld [vmem:[%s1 + $0x28] sm:$0xf]
      %v243 = vld [vmem:[%s1 + $0x2c] sm:$0xf]
      %v244 = vld [vmem:[%s1 + $0x30] sm:$0xf]
      %v245 = vld [vmem:[%s1 + $0x34] sm:$0xf]
      %v246 = vld [vmem:[%s1 + $0x38] sm:$0xf]
      %v247 = vld [vmem:[%s1 + $0x3c] sm:$0xf]
      %v248 = vld [vmem:[%s1 + $0x40] sm:$0xf]
      %v249 = vld [vmem:[%s1 + $0x44] sm:$0xf]
      %v250 = vld [vmem:[%s1 + $0x48] sm:$0xf]
      %v251 = vld [vmem:[%s1 + $0x4c] sm:$0xf]
      %v252 = vld [vmem:[%s1 + $0x50] sm:$0xf]
      %v253 = vld [vmem:[%s1 + $0x54] sm:$0xf]
      %v254 = vld [vmem:[%s1 + $0x58] sm:$0xf]
      %v255 = vld [vmem:[%s1 + $0x5c] sm:$0xf]
      %v280 = vunpack.c.l.b16 %v232
      %v281 = vunpack.c.l.b16 %v233
      %v282 = vunpack.c.l.b16 %v234
      %v283 = vunpack.c.l.b16 %v235
      %v284 = vunpack.c.l.b16 %v236
      %v285 = vunpack.c.l.b16 %v237
      %v286 = vunpack.c.l.b16 %v238
      %v287 = vunpack.c.l.b16 %v239
      %v288 = vunpack.c.l.b16 %v240
      %v289 = vunpack.c.l.b16 %v241
      %v290 = vunpack.c.l.b16 %v242
      %v291 = vunpack.c.l.b16 %v243
      %v292 = vunpack.c.l.b16 %v244
      %v293 = vunpack.c.l.b16 %v245
      %v294 = vunpack.c.l.b16 %v246
      %v295 = vunpack.c.l.b16 %v247
      %v296 = vunpack.c.l.b16 %v248
      %v297 = vunpack.c.l.b16 %v249
      %v298 = vunpack.c.l.b16 %v250
      %v299 = vunpack.c.l.b16 %v251
      %v300 = vunpack.c.l.b16 %v252
      %v301 = vunpack.c.l.b16 %v253
      %v302 = vunpack.c.l.b16 %v254
      %v303 = vunpack.c.l.b16 %v255
      %v304 = vpack.c.b16 %v281, %v280
      %v305 = vpack.c.b16 %v283, %v282
      %v306 = vpack.c.b16 %v285, %v284
      %v307 = vpack.c.b16 %v287, %v286
      %v308 = vpack.c.b16 %v289, %v288
      %v309 = vpack.c.b16 %v291, %v290
      %v310 = vpack.c.b16 %v293, %v292
      %v311 = vpack.c.b16 %v295, %v294
      %v312 = vpack.c.b16 %v297, %v296
      %v313 = vpack.c.b16 %v299, %v298
      %v314 = vpack.c.b16 %v301, %v300
      %v315 = vpack.c.b16 %v303, %v302
      %v329 = vsel %vm228, %v231, 0
      %331 = vmatprep.subr.bf16.mxu0 0
      %332 = vmatpush1.bf16.msra.mxu0 %v304
      %333 = vmatprep.subr.bf16.mxu0 0
      %334 = vmatpush1.bf16.msra.mxu0 %v305
      %335 = vmatprep.subr.bf16.mxu0 0
      %336 = vmatpush1.bf16.msra.mxu0 %v306
      %337 = vmatprep.subr.bf16.mxu0 0
      %338 = vmatpush1.bf16.msra.mxu0 %v307
      %339 = vmatprep.subr.bf16.mxu0 0
      %340 = vmatpush1.bf16.msra.mxu0 %v308
      %341 = vmatprep.subr.bf16.mxu0 0
      %342 = vmatpush1.bf16.msra.mxu0 %v309
      %343 = vmatprep.subr.bf16.mxu0 0
      %344 = vmatpush1.bf16.msra.mxu0 %v310
      %345 = vmatprep.subr.bf16.mxu0 0
      %346 = vmatpush1.bf16.msra.mxu0 %v311
      %347 = vmatprep.subr.bf16.mxu0 0
      %348 = vmatpush1.bf16.msra.mxu0 %v312
      %349 = vmatprep.subr.bf16.mxu0 0
      %350 = vmatpush1.bf16.msra.mxu0 %v313
      %351 = vmatprep.subr.bf16.mxu0 0
      %352 = vmatpush1.bf16.msra.mxu0 %v314
      %353 = vmatprep.subr.bf16.mxu0 0
      %354 = vmatpush1.bf16.msra.mxu0 %v315
      %355 = vmatprep.subr.bf16.mxu0 0
      %356 = vmatpush1.bf16.msra.mxu0 0
      %357 = vmatprep.subr.bf16.mxu0 0
      %358 = vmatpush1.bf16.msra.mxu0 0
      %359 = vmatprep.subr.bf16.mxu0 0
      %360 = vmatpush1.bf16.msra.mxu0 0
      %361 = vmatprep.subr.bf16.mxu0 0
      %362 = vmatpush1.bf16.msra.mxu0 0
      %363 = vmatprep.mubr.bf16.mxu0 %v329
      %364 = vmatmul.mubr.bf16.gmra.mrb[0].mxu0 %v230
      %v365 = vpop.f32.mrb[0].mxu0
      %v366 = vadd.f32 0.0, %v365
      %v367 = vpop.f32.mrb[0].mxu0
      %v368 = vpop.f32.mrb[0].mxu0
      %v369 = vpop.f32.mrb[0].mxu0
      %370 = vdwg.mxu0
      %371 = vst.msk [vmem:[%s205] sm:$0xff] %vm228, %v366
      %373 = vrot.lane.b32.xlu0 %v366, 64
      %v374 = vpop.permute.xlu0 %373
      %376 = vst.msk [vmem:[%s209] sm:$0xff] %vm228, %v374
      %v377 = vrot.slane %v366, 4
      %v378 = vadd.f32 %v366, %v377
      %v379 = vrot.slane %v378, 2
      %v380 = vadd.f32 %v378, %v379
      %v381 = vrot.slane %v380, 1
      %v382 = vadd.f32 %v380, %v381
      %v383 = vmul.f32 %v366, %v366
      %v384 = vrot.slane %v383, 4
      %v385 = vadd.f32 %v383, %v384
      %v386 = vrot.slane %v385, 2
      %v387 = vadd.f32 %v385, %v386
      %v388 = vrot.slane %v387, 1
      %v389 = vadd.f32 %v387, %v388
      %v390 = vsel %vm219, %v382, %v389
      %391 = vst [vmem:[%s213] sm:$0x3] %v390
      %p392 = scmp.lt.s32.totalorder %s16, 1
      %s393 = scalar_select %p392, %s16, 1
      %s394 = smul.addr %s393, 8
      %s395 = scalar_lea.vmem %s2, %s394
      %p396 = scmp.lt.s32.totalorder %s16, 1
      %s397 = scalar_select %p396, %s16, 1
      %s398 = smul.addr %s397, 8
      %s399 = scalar_lea.vmem %s3, %s398
      %p400 = scmp.lt.s32.totalorder %s16, 1
      %s401 = scalar_select %p400, %s16, 1
      %s402 = smul.addr %s401, 2
      %s403 = scalar_lea.vmem %s4, %s402
      // Predicated region
      $region29: #{resnet_block_forward.3} parent=27 // pred_check
        %p404 = pneg %p81
      $region30: #{resnet_block_forward.3} parent=27 // pred_check_branch
        %406 = sbr.rel (%p404) target = $region32
      $region31: #{resnet_block_forward.3} parent=27 // pred_region
        _
      $region32: #{resnet_block_forward.3} parent=27 // pred_fallthru
        _
      // Predicated region
      $region33: #{resnet_block_forward.3} parent=27 // pred_check
        %p407 = pneg %p107
      $region34: #{resnet_block_forward.3} parent=27 // pred_check_branch
        %409 = sbr.rel (%p407) target = $region36
      $region35: #{resnet_block_forward.3} parent=27 // pred_region
        _
      $region36: #{resnet_block_forward.3} parent=27 // pred_fallthru
        _
      // Predicated region
      $region37: #{resnet_block_forward.3} parent=27 // pred_check
        %p410 = pneg %p133
      $region38: #{resnet_block_forward.3} parent=27 // pred_check_branch
        %412 = sbr.rel (%p410) target = $region40
      $region39: #{resnet_block_forward.3} parent=27 // pred_region
        _
      $region40: #{resnet_block_forward.3} parent=27 // pred_fallthru
        _
    $region28: #{resnet_block_forward.3} parent=5 // pred_fallthru
      _
    %p413 = scmp.le.s32.totalorder 2, %s11
    // Predicated region
    $region41: #{resnet_block_forward.3} parent=5 // pred_check
      %p414 = pneg %p413
    $region42: #{resnet_block_forward.3} parent=5 // pred_check_branch
      %416 = sbr.rel (%p414) target = $region44
    $region43: #{resnet_block_forward.3} parent=5 // pred_region
      %s417 = ssub.s32 %s11, 2
      // Predicated region
      $region45: #{resnet_block_forward.3} parent=43 // pred_check
        %p418 = pneg %p87
      $region46: #{resnet_block_forward.3} parent=43 // pred_check_branch
        %420 = sbr.rel (%p418) target = $region48
      $region47: #{resnet_block_forward.3} parent=43 // pred_region
        %p421 = scmp.lt.s32.totalorder %s17, 1
        %s422 = scalar_select %p421, %s17, 1
        %s423 = smul.addr %s422, 8
        %s424 = scalar_lea.vmem %s2, %s423
      $region48: #{resnet_block_forward.3} parent=43 // pred_fallthru
        _
      // Predicated region
      $region49: #{resnet_block_forward.3} parent=43 // pred_check
        %p425 = pneg %p113
      $region50: #{resnet_block_forward.3} parent=43 // pred_check_branch
        %427 = sbr.rel (%p425) target = $region52
      $region51: #{resnet_block_forward.3} parent=43 // pred_region
        %p428 = scmp.lt.s32.totalorder %s17, 1
        %s429 = scalar_select %p428, %s17, 1
        %s430 = smul.addr %s429, 8
        %s431 = scalar_lea.vmem %s3, %s430
      $region52: #{resnet_block_forward.3} parent=43 // pred_fallthru
        _
      // Predicated region
      $region53: #{resnet_block_forward.3} parent=43 // pred_check
        %p432 = pneg %p139
      $region54: #{resnet_block_forward.3} parent=43 // pred_check_branch
        %434 = sbr.rel (%p432) target = $region56
      $region55: #{resnet_block_forward.3} parent=43 // pred_region
        %p435 = scmp.lt.s32.totalorder %s17, 1
        %s436 = scalar_select %p435, %s17, 1
        %s437 = smul.addr %s436, 2
        %s438 = scalar_lea.vmem %s4, %s437
      $region56: #{resnet_block_forward.3} parent=43 // pred_fallthru
        _
    $region44: #{resnet_block_forward.3} parent=5 // pred_fallthru
      _
  $region6: #{resnet_block_forward.3} parent=0 // loop_footer
    %s15 = sadd.s32 1, %s11
  $region7: #{resnet_block_forward.3} parent=0 // loop_footer_branch
    %10 = sbr.rel target = $region3
  $region8: #{resnet_block_forward.3} parent=0 // loop_exit
    _

// kernel: resnet_block_forward.4
$region0: #{resnet_block_forward.4}
  #allocation0 [shape = 'u32[]', space=smem, size = 0x4, offset = 0x4, fixed_abs, tag = 'smem constant byte address 0x4 - core index']
  #allocation1 [shape = 'u32[144,128]{1,0:T(1,128)}', space=vmem, size = 0x12000, scoped, tag = 'internal scratch']
  %s0 = inlined_call_operand.vmem [shape: f32[2,8,64], index: 0, kind: input, shape index: {}]
  %s1 = inlined_call_operand.vmem [shape: f32[1,64], index: 1, kind: input, shape index: {}]
  %s2 = inlined_call_operand.vmem [shape: f32[1,64], index: 2, kind: input, shape index: {}]
  %s3 = inlined_call_operand.vmem [shape: bf16[192,64], index: 3, kind: input, shape index: {}]
  %s4 = inlined_call_operand.vmem [shape: f32[2,8,64], index: 4, kind: output, shape index: {0}]
  %s5 = inlined_call_operand.vmem [shape: f32[2,2,64], index: 5, kind: output, shape index: {1}]
  %6 = xla_tuple %s4, %s5
  %s7 = sld [smem:[#allocation0]]
  $region57: #{resnet_block_forward.4} parent=0
    _
  %s9 = ssub.s32 1, %s7
  %s10 = scalar_select 0, %s9, %s7
  loop: start=0, step=1, limit=4
  $region2: #{resnet_block_forward.4} parent=0 // loop_pre_header
    _
  $region3: #{resnet_block_forward.4} parent=0 // loop_header
    %s12 = sphi 0, %s16
    %p13 = scmp.ge.s32.totalorder %s12, 4
    %s22 = sphi 0, %s24
    %s25 = sphi 0, %s22
    %s26 = sphi 0, %s25
    %s42 = sphi 0, %s26
    %s46 = sphi 0, %s46
    %s48 = sphi 0, %s46
    %s49 = sphi 0, %s48
    %s63 = sphi 0, %s49
    %s67 = sphi 0, %s67
    %s69 = sphi 0, %s67
    %s70 = sphi 0, %s69
    %s84 = sphi 0, %s70
    %s88 = sphi 0, %s88
    %s90 = sphi 0, %s88
    %s91 = sphi 0, %s90
    %s105 = sphi 0, %s91
    %s111 = sphi 0, %s113
    %s114 = sphi 0, %s111
    %s115 = sphi 0, %s114
    %s131 = sphi 0, %s115
    %s137 = sphi 0, %s139
    %s140 = sphi 0, %s137
    %s141 = sphi 0, %s140
    %s157 = sphi 0, %s141
  $region4: #{resnet_block_forward.4} parent=0 // loop_header_branch
    %15 = sbr.rel (%p13) target = $region8
  $region5: #{resnet_block_forward.4} parent=0 // loop_body
    %s17 = ssub.s32 %s12, 1
    %s18 = ssub.s32 %s12, 2
    %s19 = sadd.s32 %s12, 1
    %s20 = ssub.s32 %s12, %s19
    %p21 = scmp.eq.s32.totalorder %s20, 0
    %s23 = sadd.s32 %s22, 1
    %s24 = scalar_select %p21, %s22, %s23
    %p27 = pneg %p21
    %p28 = scmp.eq.s32.totalorder %s12, 1
    %p29 = por %p27, %p28
    %p30 = scmp.ne.s32.totalorder %s22, %s25
    %p31 = scmp.eq.s32.totalorder %s12, 0
    %p32 = por %p30, %p31
    %p33 = scmp.ne.s32.totalorder %s22, %s25
    %p34 = scmp.eq.s32.totalorder %s17, 1
    %p35 = por %p33, %p34
    %p36 = scmp.ne.s32.totalorder %s25, %s26
    %p37 = scmp.eq.s32.totalorder %s17, 0
    %p38 = por %p36, %p37
    %p39 = scmp.ne.s32.totalorder %s25, %s26
    %p40 = scmp.eq.s32.totalorder %s18, 1
    %p41 = por %p39, %p40
    %p43 = scmp.ne.s32.totalorder %s26, %s42
    %p44 = scmp.eq.s32.totalorder %s18, 0
    %p45 = por %p43, %p44
    %s47 = sadd.s32 %s46, 1
    %p50 = scmp.eq.s32.totalorder %s12, 1
    %p51 = scmp.ne.s32.totalorder %s46, %s48
    %p52 = scmp.eq.s32.totalorder %s12, 0
    %p53 = por %p51, %p52
    %p54 = scmp.ne.s32.totalorder %s46, %s48
    %p55 = scmp.eq.s32.totalorder %s17, 1
    %p56 = por %p54, %p55
    %p57 = scmp.ne.s32.totalorder %s48, %s49
    %p58 = scmp.eq.s32.totalorder %s17, 0
    %p59 = por %p57, %p58
    %p60 = scmp.ne.s32.totalorder %s48, %s49
    %p61 = scmp.eq.s32.totalorder %s18, 1
    %p62 = por %p60, %p61
    %p64 = scmp.ne.s32.totalorder %s49, %s63
    %p65 = scmp.eq.s32.totalorder %s18, 0
    %p66 = por %p64, %p65
    %s68 = sadd.s32 %s67, 1
    %p71 = scmp.eq.s32.totalorder %s12, 1
    %p72 = scmp.ne.s32.totalorder %s67, %s69
    %p73 = scmp.eq.s32.totalorder %s12, 0
    %p74 = por %p72, %p73
    %p75 = scmp.ne.s32.totalorder %s67, %s69
    %p76 = scmp.eq.s32.totalorder %s17, 1
    %p77 = por %p75, %p76
    %p78 = scmp.ne.s32.totalorder %s69, %s70
    %p79 = scmp.eq.s32.totalorder %s17, 0
    %p80 = por %p78, %p79
    %p81 = scmp.ne.s32.totalorder %s69, %s70
    %p82 = scmp.eq.s32.totalorder %s18, 1
    %p83 = por %p81, %p82
    %p85 = scmp.ne.s32.totalorder %s70, %s84
    %p86 = scmp.eq.s32.totalorder %s18, 0
    %p87 = por %p85, %p86
    %s89 = sadd.s32 %s88, 1
    %p92 = scmp.eq.s32.totalorder %s12, 1
    %p93 = scmp.ne.s32.totalorder %s88, %s90
    %p94 = scmp.eq.s32.totalorder %s12, 0
    %p95 = por %p93, %p94
    %p96 = scmp.ne.s32.totalorder %s88, %s90
    %p97 = scmp.eq.s32.totalorder %s17, 1
    %p98 = por %p96, %p97
    %p99 = scmp.ne.s32.totalorder %s90, %s91
    %p100 = scmp.eq.s32.totalorder %s17, 0
    %p101 = por %p99, %p100
    %p102 = scmp.ne.s32.totalorder %s90, %s91
    %p103 = scmp.eq.s32.totalorder %s18, 1
    %p104 = por %p102, %p103
    %p106 = scmp.ne.s32.totalorder %s91, %s105
    %p107 = scmp.eq.s32.totalorder %s18, 0
    %p108 = por %p106, %p107
    %s109 = ssub.s32 %s12, %s19
    %p110 = scmp.eq.s32.totalorder %s109, 0
    %s112 = sadd.s32 %s111, 1
    %s113 = scalar_select %p110, %s111, %s112
    %p116 = pneg %p110
    %p117 = scmp.eq.s32.totalorder %s12, 1
    %p118 = por %p116, %p117
    %p119 = scmp.ne.s32.totalorder %s111, %s114
    %p120 = scmp.eq.s32.totalorder %s12, 0
    %p121 = por %p119, %p120
    %p122 = scmp.ne.s32.totalorder %s111, %s114
    %p123 = scmp.eq.s32.totalorder %s17, 1
    %p124 = por %p122, %p123
    %p125 = scmp.ne.s32.totalorder %s114, %s115
    %p126 = scmp.eq.s32.totalorder %s17, 0
    %p127 = por %p125, %p126
    %p128 = scmp.ne.s32.totalorder %s114, %s115
    %p129 = scmp.eq.s32.totalorder %s18, 1
    %p130 = por %p128, %p129
    %p132 = scmp.ne.s32.totalorder %s115, %s131
    %p133 = scmp.eq.s32.totalorder %s18, 0
    %p134 = por %p132, %p133
    %s135 = ssub.s32 %s12, %s19
    %p136 = scmp.eq.s32.totalorder %s135, 0
    %s138 = sadd.s32 %s137, 1
    %s139 = scalar_select %p136, %s137, %s138
    %p142 = pneg %p136
    %p143 = scmp.eq.s32.totalorder %s12, 1
    %p144 = por %p142, %p143
    %p145 = scmp.ne.s32.totalorder %s137, %s140
    %p146 = scmp.eq.s32.totalorder %s12, 0
    %p147 = por %p145, %p146
    %p148 = scmp.ne.s32.totalorder %s137, %s140
    %p149 = scmp.eq.s32.totalorder %s17, 1
    %p150 = por %p148, %p149
    %p151 = scmp.ne.s32.totalorder %s140, %s141
    %p152 = scmp.eq.s32.totalorder %s17, 0
    %p153 = por %p151, %p152
    %p154 = scmp.ne.s32.totalorder %s140, %s141
    %p155 = scmp.eq.s32.totalorder %s18, 1
    %p156 = por %p154, %p155
    %p158 = scmp.ne.s32.totalorder %s141, %s157
    %p159 = scmp.eq.s32.totalorder %s18, 0
    %p160 = por %p158, %p159
    %p161 = scmp.le.s32.totalorder 1, %s12
    %p162 = scmp.lt.s32.totalorder %s12, 3
    %p163 = pnand %p161, %p162
    %p164 = pneg %p163
    // Predicated region
    $region9: #{resnet_block_forward.4} parent=5 // pred_check
      _
    $region10: #{resnet_block_forward.4} parent=5 // pred_check_branch
      %166 = sbr.rel (%p163) target = $region12
    $region11: #{resnet_block_forward.4} parent=5 // pred_region
      %s167 = ssub.s32 %s12, 1
      // Predicated region
      $region13: #{resnet_block_forward.4} parent=11 // pred_check
        %p168 = pneg %p59
      $region14: #{resnet_block_forward.4} parent=11 // pred_check_branch
        %170 = sbr.rel (%p168) target = $region16
      $region15: #{resnet_block_forward.4} parent=11 // pred_region
        _
      $region16: #{resnet_block_forward.4} parent=11 // pred_fallthru
        _
      // Predicated region
      $region17: #{resnet_block_forward.4} parent=11 // pred_check
        %p171 = pneg %p80
      $region18: #{resnet_block_forward.4} parent=11 // pred_check_branch
        %173 = sbr.rel (%p171) target = $region20
      $region19: #{resnet_block_forward.4} parent=11 // pred_region
        _
      $region20: #{resnet_block_forward.4} parent=11 // pred_fallthru
        _
      // Predicated region
      $region21: #{resnet_block_forward.4} parent=11 // pred_check
        %p174 = pneg %p101
      $region22: #{resnet_block_forward.4} parent=11 // pred_check_branch
        %176 = sbr.rel (%p174) target = $region24
      $region23: #{resnet_block_forward.4} parent=11 // pred_region
        _
      $region24: #{resnet_block_forward.4} parent=11 // pred_fallthru
        _
    $region12: #{resnet_block_forward.4} parent=5 // pred_fallthru
      _
    %p177 = scmp.lt.s32.totalorder %s12, 2
    // Predicated region
    $region25: #{resnet_block_forward.4} parent=5 // pred_check
      %p178 = pneg %p177
    $region26: #{resnet_block_forward.4} parent=5 // pred_check_branch
      %180 = sbr.rel (%p178) target = $region28
    $region27: #{resnet_block_forward.4} parent=5 // pred_region
      // Predicated region
      $region29: #{resnet_block_forward.4} parent=27 // pred_check
        %p181 = pneg %p32
      $region30: #{resnet_block_forward.4} parent=27 // pred_check_branch
        %183 = sbr.rel (%p181) target = $region32
      $region31: #{resnet_block_forward.4} parent=27 // pred_region
        %p184 = scmp.lt.s32.totalorder %s12, 1
        %s185 = scalar_select %p184, %s12, 1
        %s186 = smul.addr %s185, 8
        %s187 = scalar_lea.vmem %s0, %s186
      $region32: #{resnet_block_forward.4} parent=27 // pred_fallthru
        _
    $region28: #{resnet_block_forward.4} parent=5 // pred_fallthru
      _
    %p188 = scmp.le.s32.totalorder 1, %s12
    %p189 = scmp.lt.s32.totalorder %s12, 3
    %p190 = pnand %p188, %p189
    %p191 = pneg %p190
    // Predicated region
    $region33: #{resnet_block_forward.4} parent=5 // pred_check
      _
    $region34: #{resnet_block_forward.4} parent=5 // pred_check_branch
      %193 = sbr.rel (%p190) target = $region36
    $region35: #{resnet_block_forward.4} parent=5 // pred_region
      %s194 = ssub.s32 %s12, 1
      %p195 = scmp.lt.s32.totalorder %s17, 1
      %s196 = scalar_select %p195, %s17, 1
      %s197 = smul.addr %s196, 8
      %s198 = scalar_lea.vmem %s0, %s197
      %p199 = pneg %p38
      %p200 = pneg %p35
      %p201 = pneg %p59
      %p202 = pneg %p56
      %p203 = pneg %p80
      %p204 = pneg %p77
      %p205 = pneg %p101
      %p206 = pneg %p98
      %p207 = pneg %p127
      %p208 = pneg %p124
      %p209 = scmp.lt.s32.totalorder %s17, 1
      %s210 = scalar_select %p209, %s17, 1
      %s211 = smul.addr %s210, 8
      %s212 = scalar_lea.vmem %s4, %s211
      %p213 = pneg %p153
      %p214 = pneg %p150
      %p215 = scmp.lt.s32.totalorder %s17, 1
      %s216 = scalar_select %p215, %s17, 1
      %s217 = smul.addr %s216, 2
      %s218 = scalar_lea.vmem %s5, %s217
      %p219 = scmp.lt.s32.totalorder %s17, 1
      %s220 = scalar_select %p219, %s17, 1
      %s221 = smul.addr %s220, 8
      %s222 = scalar_lea.vmem %s0, %s221
      %p223 = scmp.lt.s32.totalorder %s17, 1
      %s224 = scalar_select %p223, %s17, 1
      %s225 = smul.addr %s224, 8
      %s226 = scalar_lea.vmem %s4, %s225
      %p227 = scmp.lt.s32.totalorder %s17, 1
      %s228 = scalar_select %p227, %s17, 1
      %s229 = smul.addr %s228, 2
      %s230 = scalar_lea.vmem %s5, %s229
      %v232 = vld [vmem:[%s1] sm:$0x1]
      %v233 = vld [vmem:[%s222] sm:$0xff]
      %v235 = vlaneseq
      %v236 = vshrl.u32 %v235, 7
      %v237 = vsub.s32 0, %v236
      %v238 = vrot.slane %v232, %v237
      %v240 = vmul.f32 %v238, %v233
      %v241 = vld [vmem:[%s2] sm:$0x1]
      %v243 = vlaneseq
      %v244 = vshrl.u32 %v243, 7
      %v245 = vsub.s32 0, %v244
      %v246 = vrot.slane %v241, %v245
      %v248 = vadd.f32 %v240, %v246
      %v249 = vmax.f32 %v248, 0.0
      %v251 = vrot.slane %v249, 7
      %vm253 = vcmask 1040384
      %v254 = vsel %vm253, %v251, %v251
      %v255 = vrot.slane %v249, 1
      %vm257 = vcmask 1046528
      %v258 = vsel %vm257, %v255, %v255
      %259 = vrot.lane.b32.xlu0 %v249, 64
      %v260 = vpop.permute.xlu0 %259
      %vm262 = vcmask 523264
      %v263 = vsel %vm262, %v254, %v260
      %v264 = vpack.c.bf16 %v263, %v263
      %v265 = vpack.c.bf16 %v258, %v258
      %v266 = vld [vmem:[%s3] sm:$0xf]
      %v267 = vld [vmem:[%s3 + $0x4] sm:$0xf]
      %v268 = vld [vmem:[%s3 + $0x8] sm:$0xf]
      %v269 = vld [vmem:[%s3 + $0xc] sm:$0xf]
      %v270 = vld [vmem:[%s3 + $0x10] sm:$0xf]
      %v271 = vld [vmem:[%s3 + $0x14] sm:$0xf]
      %v272 = vld [vmem:[%s3 + $0x18] sm:$0xf]
      %v273 = vld [vmem:[%s3 + $0x1c] sm:$0xf]
      %v274 = vld [vmem:[%s3 + $0x20] sm:$0xf]
      %v275 = vld [vmem:[%s3 + $0x24] sm:$0xf]
      %v276 = vld [vmem:[%s3 + $0x28] sm:$0xf]
      %v277 = vld [vmem:[%s3 + $0x2c] sm:$0xf]
      %v278 = vld [vmem:[%s3 + $0x30] sm:$0xf]
      %v279 = vld [vmem:[%s3 + $0x34] sm:$0xf]
      %v280 = vld [vmem:[%s3 + $0x38] sm:$0xf]
      %v281 = vld [vmem:[%s3 + $0x3c] sm:$0xf]
      %v282 = vld [vmem:[%s3 + $0x40] sm:$0xf]
      %v283 = vld [vmem:[%s3 + $0x44] sm:$0xf]
      %v284 = vld [vmem:[%s3 + $0x48] sm:$0xf]
      %v285 = vld [vmem:[%s3 + $0x4c] sm:$0xf]
      %v286 = vld [vmem:[%s3 + $0x50] sm:$0xf]
      %v287 = vld [vmem:[%s3 + $0x54] sm:$0xf]
      %v288 = vld [vmem:[%s3 + $0x58] sm:$0xf]
      %v289 = vld [vmem:[%s3 + $0x5c] sm:$0xf]
      %v314 = vunpack.c.l.b16 %v266
      %v315 = vunpack.c.l.b16 %v267
      %v316 = vunpack.c.l.b16 %v268
      %v317 = vunpack.c.l.b16 %v269
      %v318 = vunpack.c.l.b16 %v270
      %v319 = vunpack.c.l.b16 %v271
      %v320 = vunpack.c.l.b16 %v272
      %v321 = vunpack.c.l.b16 %v273
      %v322 = vunpack.c.l.b16 %v274
      %v323 = vunpack.c.l.b16 %v275
      %v324 = vunpack.c.l.b16 %v276
      %v325 = vunpack.c.l.b16 %v277
      %v326 = vunpack.c.l.b16 %v278
      %v327 = vunpack.c.l.b16 %v279
      %v328 = vunpack.c.l.b16 %v280
      %v329 = vunpack.c.l.b16 %v281
      %v330 = vunpack.c.l.b16 %v282
      %v331 = vunpack.c.l.b16 %v283
      %v332 = vunpack.c.l.b16 %v284
      %v333 = vunpack.c.l.b16 %v285
      %v334 = vunpack.c.l.b16 %v286
      %v335 = vunpack.c.l.b16 %v287
      %v336 = vunpack.c.l.b16 %v288
      %v337 = vunpack.c.l.b16 %v289
      %v338 = vpack.c.b16 %v315, %v314
      %v339 = vpack.c.b16 %v317, %v316
      %v340 = vpack.c.b16 %v319, %v318
      %v341 = vpack.c.b16 %v321, %v320
      %v342 = vpack.c.b16 %v323, %v322
      %v343 = vpack.c.b16 %v325, %v324
      %v344 = vpack.c.b16 %v327, %v326
      %v345 = vpack.c.b16 %v329, %v328
      %v346 = vpack.c.b16 %v331, %v330
      %v347 = vpack.c.b16 %v333, %v332
      %v348 = vpack.c.b16 %v335, %v334
      %v349 = vpack.c.b16 %v337, %v336
      %v363 = vsel %vm262, %v265, 0
      %365 = vmatprep.subr.bf16.mxu0 0
      %366 = vmatpush1.bf16.msra.mxu0 %v338
      %367 = vmatprep.subr.bf16.mxu0 0
      %368 = vmatpush1.bf16.msra.mxu0 %v339
      %369 = vmatprep.subr.bf16.mxu0 0
      %370 = vmatpush1.bf16.msra.mxu0 %v340
      %371 = vmatprep.subr.bf16.mxu0 0
      %372 = vmatpush1.bf16.msra.mxu0 %v341
      %373 = vmatprep.subr.bf16.mxu0 0
      %374 = vmatpush1.bf16.msra.mxu0 %v342
      %375 = vmatprep.subr.bf16.mxu0 0
      %376 = vmatpush1.bf16.msra.mxu0 %v343
      %377 = vmatprep.subr.bf16.mxu0 0
      %378 = vmatpush1.bf16.msra.mxu0 %v344
      %379 = vmatprep.subr.bf16.mxu0 0
      %380 = vmatpush1.bf16.msra.mxu0 %v345
      %381 = vmatprep.subr.bf16.mxu0 0
      %382 = vmatpush1.bf16.msra.mxu0 %v346
      %383 = vmatprep.subr.bf16.mxu0 0
      %384 = vmatpush1.bf16.msra.mxu0 %v347
      %385 = vmatprep.subr.bf16.mxu0 0
      %386 = vmatpush1.bf16.msra.mxu0 %v348
      %387 = vmatprep.subr.bf16.mxu0 0
      %388 = vmatpush1.bf16.msra.mxu0 %v349
      %389 = vmatprep.subr.bf16.mxu0 0
      %390 = vmatpush1.bf16.msra.mxu0 0
      %391 = vmatprep.subr.bf16.mxu0 0
      %392 = vmatpush1.bf16.msra.mxu0 0
      %393 = vmatprep.subr.bf16.mxu0 0
      %394 = vmatpush1.bf16.msra.mxu0 0
      %395 = vmatprep.subr.bf16.mxu0 0
      %396 = vmatpush1.bf16.msra.mxu0 0
      %397 = vmatprep.mubr.bf16.mxu0 %v363
      %398 = vmatmul.mubr.bf16.gmra.mrb[0].mxu0 %v264
      %v399 = vpop.f32.mrb[0].mxu0
      %v400 = vadd.f32 0.0, %v399
      %v401 = vpop.f32.mrb[0].mxu0
      %v402 = vpop.f32.mrb[0].mxu0
      %v403 = vpop.f32.mrb[0].mxu0
      %404 = vdwg.mxu0
      %405 = vst.msk [vmem:[%s226] sm:$0xff] %vm262, %v400
      %v406 = vsel %vm262, %v400, 0.0
      %v407 = vrot.slane %v406, 4
      %v408 = vadd.f32 %v406, %v407
      %v409 = vrot.slane %v408, 2
      %v410 = vadd.f32 %v408, %v409
      %v411 = vrot.slane %v410, 1
      %v412 = vadd.f32 %v410, %v411
      %v413 = vmul.f32 %v400, %v400
      %v414 = vsel %vm262, %v413, 0.0
      %v415 = vrot.slane %v414, 4
      %v416 = vadd.f32 %v414, %v415
      %v417 = vrot.slane %v416, 2
      %v418 = vadd.f32 %v416, %v417
      %v419 = vrot.slane %v418, 1
      %v420 = vadd.f32 %v418, %v419
      %v421 = vsel %vm253, %v412, %v420
      %vm422 = vcmask 517120
      %423 = vst.msk [vmem:[%s230] sm:$0x3] %vm422, %v421
      %p424 = scmp.lt.s32.totalorder %s17, 1
      %s425 = scalar_select %p424, %s17, 1
      %s426 = smul.addr %s425, 8
      %s427 = scalar_lea.vmem %s4, %s426
      %p428 = scmp.lt.s32.totalorder %s17, 1
      %s429 = scalar_select %p428, %s17, 1
      %s430 = smul.addr %s429, 2
      %s431 = scalar_lea.vmem %s5, %s430
      // Predicated region
      $region37: #{resnet_block_forward.4} parent=35 // pred_check
        %p432 = pneg %p124
      $region38: #{resnet_block_forward.4} parent=35 // pred_check_branch
        %434 = sbr.rel (%p432) target = $region40
      $region39: #{resnet_block_forward.4} parent=35 // pred_region
        _
      $region40: #{resnet_block_forward.4} parent=35 // pred_fallthru
        _
      // Predicated region
      $region41: #{resnet_block_forward.4} parent=35 // pred_check
        %p435 = pneg %p150
      $region42: #{resnet_block_forward.4} parent=35 // pred_check_branch
        %437 = sbr.rel (%p435) target = $region44
      $region43: #{resnet_block_forward.4} parent=35 // pred_region
        _
      $region44: #{resnet_block_forward.4} parent=35 // pred_fallthru
        _
    $region36: #{resnet_block_forward.4} parent=5 // pred_fallthru
      _
    %p438 = scmp.le.s32.totalorder 2, %s12
    // Predicated region
    $region45: #{resnet_block_forward.4} parent=5 // pred_check
      %p439 = pneg %p438
    $region46: #{resnet_block_forward.4} parent=5 // pred_check_branch
      %441 = sbr.rel (%p439) target = $region48
    $region47: #{resnet_block_forward.4} parent=5 // pred_region
      %s442 = ssub.s32 %s12, 2
      // Predicated region
      $region49: #{resnet_block_forward.4} parent=47 // pred_check
        %p443 = pneg %p130
      $region50: #{resnet_block_forward.4} parent=47 // pred_check_branch
        %445 = sbr.rel (%p443) target = $region52
      $region51: #{resnet_block_forward.4} parent=47 // pred_region
        %p446 = scmp.lt.s32.totalorder %s18, 1
        %s447 = scalar_select %p446, %s18, 1
        %s448 = smul.addr %s447, 8
        %s449 = scalar_lea.vmem %s4, %s448
      $region52: #{resnet_block_forward.4} parent=47 // pred_fallthru
        _
      // Predicated region
      $region53: #{resnet_block_forward.4} parent=47 // pred_check
        %p450 = pneg %p156
      $region54: #{resnet_block_forward.4} parent=47 // pred_check_branch
        %452 = sbr.rel (%p450) target = $region56
      $region55: #{resnet_block_forward.4} parent=47 // pred_region
        %p453 = scmp.lt.s32.totalorder %s18, 1
        %s454 = scalar_select %p453, %s18, 1
        %s455 = smul.addr %s454, 2
        %s456 = scalar_lea.vmem %s5, %s455
      $region56: #{resnet_block_forward.4} parent=47 // pred_fallthru
        _
    $region48: #{resnet_block_forward.4} parent=5 // pred_fallthru
      _
  $region6: #{resnet_block_forward.4} parent=0 // loop_footer
    %s16 = sadd.s32 1, %s12
  $region7: #{resnet_block_forward.4} parent=0 // loop_footer_branch
    %11 = sbr.rel target = $region3
  $region8: #{resnet_block_forward.4} parent=0 // loop_exit
    _

// kernel: resnet_block_forward.5
$region0: #{resnet_block_forward.5}
  #allocation0 [shape = 'u32[]', space=smem, size = 0x4, offset = 0x4, fixed_abs, tag = 'smem constant byte address 0x4 - core index']
  #allocation1 [shape = 'u32[144,128]{1,0:T(1,128)}', space=vmem, size = 0x12000, scoped, tag = 'internal scratch']
  %s0 = inlined_call_operand.vmem [shape: f32[2,8,64], index: 0, kind: input, shape index: {}, may-alias: {0,6}]
  %s1 = inlined_call_operand.vmem [shape: f32[2,8,64], index: 1, kind: input, shape index: {}]
  %s2 = inlined_call_operand.vmem [shape: f32[1,64], index: 2, kind: input, shape index: {}]
  %s3 = inlined_call_operand.vmem [shape: f32[1,64], index: 3, kind: input, shape index: {}]
  %s4 = inlined_call_operand.vmem [shape: f32[1,64], index: 4, kind: input, shape index: {}]
  %s5 = inlined_call_operand.vmem [shape: f32[1,64], index: 5, kind: input, shape index: {}]
  %s6 = inlined_call_operand.vmem [shape: f32[2,8,64], index: 6, kind: output, shape index: {}, may-alias: {0,6}]
  %s7 = sld [smem:[#allocation0]]
  $region57: #{resnet_block_forward.5} parent=0
    _
  %s9 = ssub.s32 1, %s7
  %s10 = scalar_select 0, %s9, %s7
  loop: start=0, step=1, limit=4
  $region2: #{resnet_block_forward.5} parent=0 // loop_pre_header
    _
  $region3: #{resnet_block_forward.5} parent=0 // loop_header
    %s12 = sphi 0, %s16
    %p13 = scmp.ge.s32.totalorder %s12, 4
    %s22 = sphi 0, %s24
    %s25 = sphi 0, %s22
    %s26 = sphi 0, %s25
    %s42 = sphi 0, %s26
    %s48 = sphi 0, %s50
    %s51 = sphi 0, %s48
    %s52 = sphi 0, %s51
    %s68 = sphi 0, %s52
    %s72 = sphi 0, %s72
    %s74 = sphi 0, %s72
    %s75 = sphi 0, %s74
    %s89 = sphi 0, %s75
    %s93 = sphi 0, %s93
    %s95 = sphi 0, %s93
    %s96 = sphi 0, %s95
    %s110 = sphi 0, %s96
    %s114 = sphi 0, %s114
    %s116 = sphi 0, %s114
    %s117 = sphi 0, %s116
    %s131 = sphi 0, %s117
    %s135 = sphi 0, %s135
    %s137 = sphi 0, %s135
    %s138 = sphi 0, %s137
    %s152 = sphi 0, %s138
    %s158 = sphi 0, %s160
    %s161 = sphi 0, %s158
    %s162 = sphi 0, %s161
    %s178 = sphi 0, %s162
  $region4: #{resnet_block_forward.5} parent=0 // loop_header_branch
    %15 = sbr.rel (%p13) target = $region8
  $region5: #{resnet_block_forward.5} parent=0 // loop_body
    %s17 = ssub.s32 %s12, 1
    %s18 = ssub.s32 %s12, 2
    %s19 = sadd.s32 %s12, 1
    %s20 = ssub.s32 %s12, %s19
    %p21 = scmp.eq.s32.totalorder %s20, 0
    %s23 = sadd.s32 %s22, 1
    %s24 = scalar_select %p21, %s22, %s23
    %p27 = pneg %p21
    %p28 = scmp.eq.s32.totalorder %s12, 1
    %p29 = por %p27, %p28
    %p30 = scmp.ne.s32.totalorder %s22, %s25
    %p31 = scmp.eq.s32.totalorder %s12, 0
    %p32 = por %p30, %p31
    %p33 = scmp.ne.s32.totalorder %s22, %s25
    %p34 = scmp.eq.s32.totalorder %s17, 1
    %p35 = por %p33, %p34
    %p36 = scmp.ne.s32.totalorder %s25, %s26
    %p37 = scmp.eq.s32.totalorder %s17, 0
    %p38 = por %p36, %p37
    %p39 = scmp.ne.s32.totalorder %s25, %s26
    %p40 = scmp.eq.s32.totalorder %s18, 1
    %p41 = por %p39, %p40
    %p43 = scmp.ne.s32.totalorder %s26, %s42
    %p44 = scmp.eq.s32.totalorder %s18, 0
    %p45 = por %p43, %p44
    %s46 = ssub.s32 %s12, %s19
    %p47 = scmp.eq.s32.totalorder %s46, 0
    %s49 = sadd.s32 %s48, 1
    %s50 = scalar_select %p47, %s48, %s49
    %p53 = pneg %p47
    %p54 = scmp.eq.s32.totalorder %s12, 1
    %p55 = por %p53, %p54
    %p56 = scmp.ne.s32.totalorder %s48, %s51
    %p57 = scmp.eq.s32.totalorder %s12, 0
    %p58 = por %p56, %p57
    %p59 = scmp.ne.s32.totalorder %s48, %s51
    %p60 = scmp.eq.s32.totalorder %s17, 1
    %p61 = por %p59, %p60
    %p62 = scmp.ne.s32.totalorder %s51, %s52
    %p63 = scmp.eq.s32.totalorder %s17, 0
    %p64 = por %p62, %p63
    %p65 = scmp.ne.s32.totalorder %s51, %s52
    %p66 = scmp.eq.s32.totalorder %s18, 1
    %p67 = por %p65, %p66
    %p69 = scmp.ne.s32.totalorder %s52, %s68
    %p70 = scmp.eq.s32.totalorder %s18, 0
    %p71 = por %p69, %p70
    %s73 = sadd.s32 %s72, 1
    %p76 = scmp.eq.s32.totalorder %s12, 1
    %p77 = scmp.ne.s32.totalorder %s72, %s74
    %p78 = scmp.eq.s32.totalorder %s12, 0
    %p79 = por %p77, %p78
    %p80 = scmp.ne.s32.totalorder %s72, %s74
    %p81 = scmp.eq.s32.totalorder %s17, 1
    %p82 = por %p80, %p81
    %p83 = scmp.ne.s32.totalorder %s74, %s75
    %p84 = scmp.eq.s32.totalorder %s17, 0
    %p85 = por %p83, %p84
    %p86 = scmp.ne.s32.totalorder %s74, %s75
    %p87 = scmp.eq.s32.totalorder %s18, 1
    %p88 = por %p86, %p87
    %p90 = scmp.ne.s32.totalorder %s75, %s89
    %p91 = scmp.eq.s32.totalorder %s18, 0
    %p92 = por %p90, %p91
    %s94 = sadd.s32 %s93, 1
    %p97 = scmp.eq.s32.totalorder %s12, 1
    %p98 = scmp.ne.s32.totalorder %s93, %s95
    %p99 = scmp.eq.s32.totalorder %s12, 0
    %p100 = por %p98, %p99
    %p101 = scmp.ne.s32.totalorder %s93, %s95
    %p102 = scmp.eq.s32.totalorder %s17, 1
    %p103 = por %p101, %p102
    %p104 = scmp.ne.s32.totalorder %s95, %s96
    %p105 = scmp.eq.s32.totalorder %s17, 0
    %p106 = por %p104, %p105
    %p107 = scmp.ne.s32.totalorder %s95, %s96
    %p108 = scmp.eq.s32.totalorder %s18, 1
    %p109 = por %p107, %p108
    %p111 = scmp.ne.s32.totalorder %s96, %s110
    %p112 = scmp.eq.s32.totalorder %s18, 0
    %p113 = por %p111, %p112
    %s115 = sadd.s32 %s114, 1
    %p118 = scmp.eq.s32.totalorder %s12, 1
    %p119 = scmp.ne.s32.totalorder %s114, %s116
    %p120 = scmp.eq.s32.totalorder %s12, 0
    %p121 = por %p119, %p120
    %p122 = scmp.ne.s32.totalorder %s114, %s116
    %p123 = scmp.eq.s32.totalorder %s17, 1
    %p124 = por %p122, %p123
    %p125 = scmp.ne.s32.totalorder %s116, %s117
    %p126 = scmp.eq.s32.totalorder %s17, 0
    %p127 = por %p125, %p126
    %p128 = scmp.ne.s32.totalorder %s116, %s117
    %p129 = scmp.eq.s32.totalorder %s18, 1
    %p130 = por %p128, %p129
    %p132 = scmp.ne.s32.totalorder %s117, %s131
    %p133 = scmp.eq.s32.totalorder %s18, 0
    %p134 = por %p132, %p133
    %s136 = sadd.s32 %s135, 1
    %p139 = scmp.eq.s32.totalorder %s12, 1
    %p140 = scmp.ne.s32.totalorder %s135, %s137
    %p141 = scmp.eq.s32.totalorder %s12, 0
    %p142 = por %p140, %p141
    %p143 = scmp.ne.s32.totalorder %s135, %s137
    %p144 = scmp.eq.s32.totalorder %s17, 1
    %p145 = por %p143, %p144
    %p146 = scmp.ne.s32.totalorder %s137, %s138
    %p147 = scmp.eq.s32.totalorder %s17, 0
    %p148 = por %p146, %p147
    %p149 = scmp.ne.s32.totalorder %s137, %s138
    %p150 = scmp.eq.s32.totalorder %s18, 1
    %p151 = por %p149, %p150
    %p153 = scmp.ne.s32.totalorder %s138, %s152
    %p154 = scmp.eq.s32.totalorder %s18, 0
    %p155 = por %p153, %p154
    %s156 = ssub.s32 %s12, %s19
    %p157 = scmp.eq.s32.totalorder %s156, 0
    %s159 = sadd.s32 %s158, 1
    %s160 = scalar_select %p157, %s158, %s159
    %p163 = pneg %p157
    %p164 = scmp.eq.s32.totalorder %s12, 1
    %p165 = por %p163, %p164
    %p166 = scmp.ne.s32.totalorder %s158, %s161
    %p167 = scmp.eq.s32.totalorder %s12, 0
    %p168 = por %p166, %p167
    %p169 = scmp.ne.s32.totalorder %s158, %s161
    %p170 = scmp.eq.s32.totalorder %s17, 1
    %p171 = por %p169, %p170
    %p172 = scmp.ne.s32.totalorder %s161, %s162
    %p173 = scmp.eq.s32.totalorder %s17, 0
    %p174 = por %p172, %p173
    %p175 = scmp.ne.s32.totalorder %s161, %s162
    %p176 = scmp.eq.s32.totalorder %s18, 1
    %p177 = por %p175, %p176
    %p179 = scmp.ne.s32.totalorder %s162, %s178
    %p180 = scmp.eq.s32.totalorder %s18, 0
    %p181 = por %p179, %p180
    %p182 = scmp.le.s32.totalorder 1, %s12
    %p183 = scmp.lt.s32.totalorder %s12, 3
    %p184 = pnand %p182, %p183
    %p185 = pneg %p184
    // Predicated region
    $region9: #{resnet_block_forward.5} parent=5 // pred_check
      _
    $region10: #{resnet_block_forward.5} parent=5 // pred_check_branch
      %187 = sbr.rel (%p184) target = $region12
    $region11: #{resnet_block_forward.5} parent=5 // pred_region
      %s188 = ssub.s32 %s12, 1
      // Predicated region
      $region13: #{resnet_block_forward.5} parent=11 // pred_check
        %p189 = pneg %p85
      $region14: #{resnet_block_forward.5} parent=11 // pred_check_branch
        %191 = sbr.rel (%p189) target = $region16
      $region15: #{resnet_block_forward.5} parent=11 // pred_region
        _
      $region16: #{resnet_block_forward.5} parent=11 // pred_fallthru
        _
      // Predicated region
      $region17: #{resnet_block_forward.5} parent=11 // pred_check
        %p192 = pneg %p106
      $region18: #{resnet_block_forward.5} parent=11 // pred_check_branch
        %194 = sbr.rel (%p192) target = $region20
      $region19: #{resnet_block_forward.5} parent=11 // pred_region
        _
      $region20: #{resnet_block_forward.5} parent=11 // pred_fallthru
        _
      // Predicated region
      $region21: #{resnet_block_forward.5} parent=11 // pred_check
        %p195 = pneg %p127
      $region22: #{resnet_block_forward.5} parent=11 // pred_check_branch
        %197 = sbr.rel (%p195) target = $region24
      $region23: #{resnet_block_forward.5} parent=11 // pred_region
        _
      $region24: #{resnet_block_forward.5} parent=11 // pred_fallthru
        _
      // Predicated region
      $region25: #{resnet_block_forward.5} parent=11 // pred_check
        %p198 = pneg %p148
      $region26: #{resnet_block_forward.5} parent=11 // pred_check_branch
        %200 = sbr.rel (%p198) target = $region28
      $region27: #{resnet_block_forward.5} parent=11 // pred_region
        _
      $region28: #{resnet_block_forward.5} parent=11 // pred_fallthru
        _
    $region12: #{resnet_block_forward.5} parent=5 // pred_fallthru
      _
    %p201 = scmp.lt.s32.totalorder %s12, 2
    // Predicated region
    $region29: #{resnet_block_forward.5} parent=5 // pred_check
      %p202 = pneg %p201
    $region30: #{resnet_block_forward.5} parent=5 // pred_check_branch
      %204 = sbr.rel (%p202) target = $region32
    $region31: #{resnet_block_forward.5} parent=5 // pred_region
      // Predicated region
      $region33: #{resnet_block_forward.5} parent=31 // pred_check
        %p205 = pneg %p32
      $region34: #{resnet_block_forward.5} parent=31 // pred_check_branch
        %207 = sbr.rel (%p205) target = $region36
      $region35: #{resnet_block_forward.5} parent=31 // pred_region
        %p208 = scmp.lt.s32.totalorder %s12, 1
        %s209 = scalar_select %p208, %s12, 1
        %s210 = smul.addr %s209, 8
        %s211 = scalar_lea.vmem %s0, %s210
      $region36: #{resnet_block_forward.5} parent=31 // pred_fallthru
        _
      // Predicated region
      $region37: #{resnet_block_forward.5} parent=31 // pred_check
        %p212 = pneg %p58
      $region38: #{resnet_block_forward.5} parent=31 // pred_check_branch
        %214 = sbr.rel (%p212) target = $region40
      $region39: #{resnet_block_forward.5} parent=31 // pred_region
        %p215 = scmp.lt.s32.totalorder %s12, 1
        %s216 = scalar_select %p215, %s12, 1
        %s217 = smul.addr %s216, 8
        %s218 = scalar_lea.vmem %s1, %s217
      $region40: #{resnet_block_forward.5} parent=31 // pred_fallthru
        _
    $region32: #{resnet_block_forward.5} parent=5 // pred_fallthru
      _
    %p219 = scmp.le.s32.totalorder 1, %s12
    %p220 = scmp.lt.s32.totalorder %s12, 3
    %p221 = pnand %p219, %p220
    %p222 = pneg %p221
    // Predicated region
    $region41: #{resnet_block_forward.5} parent=5 // pred_check
      _
    $region42: #{resnet_block_forward.5} parent=5 // pred_check_branch
      %224 = sbr.rel (%p221) target = $region44
    $region43: #{resnet_block_forward.5} parent=5 // pred_region
      %s225 = ssub.s32 %s12, 1
      %p226 = scmp.lt.s32.totalorder %s17, 1
      %s227 = scalar_select %p226, %s17, 1
      %s228 = smul.addr %s227, 8
      %s229 = scalar_lea.vmem %s0, %s228
      %p230 = pneg %p38
      %p231 = pneg %p35
      %p232 = scmp.lt.s32.totalorder %s17, 1
      %s233 = scalar_select %p232, %s17, 1
      %s234 = smul.addr %s233, 8
      %s235 = scalar_lea.vmem %s1, %s234
      %p236 = pneg %p64
      %p237 = pneg %p61
      %p238 = pneg %p85
      %p239 = pneg %p82
      %p240 = pneg %p106
      %p241 = pneg %p103
      %p242 = pneg %p127
      %p243 = pneg %p124
      %p244 = pneg %p148
      %p245 = pneg %p145
      %p246 = pneg %p174
      %p247 = pneg %p171
      %p248 = scmp.lt.s32.totalorder %s17, 1
      %s249 = scalar_select %p248, %s17, 1
      %s250 = smul.addr %s249, 8
      %s251 = scalar_lea.vmem %s6, %s250
      %p252 = scmp.lt.s32.totalorder %s17, 1
      %s253 = scalar_select %p252, %s17, 1
      %s254 = smul.addr %s253, 8
      %s255 = scalar_lea.vmem %s0, %s254
      %p256 = scmp.lt.s32.totalorder %s17, 1
      %s257 = scalar_select %p256, %s17, 1
      %s258 = smul.addr %s257, 8
      %s259 = scalar_lea.vmem %s1, %s258
      %p260 = scmp.lt.s32.totalorder %s17, 1
      %s261 = scalar_select %p260, %s17, 1
      %s262 = smul.addr %s261, 8
      %s263 = scalar_lea.vmem %s6, %s262
      %v264 = vld [vmem:[%s2] sm:$0x1]
      %v265 = vld [vmem:[%s255] sm:$0xff]
      %v267 = vlaneseq
      %v268 = vshrl.u32 %v267, 7
      %v269 = vsub.s32 0, %v268
      %v270 = vrot.slane %v264, %v269
      %v272 = vmul.f32 %v270, %v265
      %v273 = vld [vmem:[%s3] sm:$0x1]
      %v275 = vlaneseq
      %v276 = vshrl.u32 %v275, 7
      %v277 = vsub.s32 0, %v276
      %v278 = vrot.slane %v273, %v277
      %v280 = vadd.f32 %v272, %v278
      %v281 = vld [vmem:[%s4] sm:$0x1]
      %v282 = vld [vmem:[%s259] sm:$0xff]
      %v284 = vlaneseq
      %v285 = vshrl.u32 %v284, 7
      %v286 = vsub.s32 0, %v285
      %v287 = vrot.slane %v281, %v286
      %v289 = vmul.f32 %v287, %v282
      %v290 = vadd.f32 %v280, %v289
      %v291 = vld [vmem:[%s5] sm:$0x1]
      %v293 = vlaneseq
      %v294 = vshrl.u32 %v293, 7
      %v295 = vsub.s32 0, %v294
      %v296 = vrot.slane %v291, %v295
      %v298 = vadd.f32 %v290, %v296
      %v299 = vmax.f32 %v298, 0.0
      %vm300 = vcmask 523264
      %301 = vst.msk [vmem:[%s263] sm:$0xff] %vm300, %v299
      %p302 = scmp.lt.s32.totalorder %s17, 1
      %s303 = scalar_select %p302, %s17, 1
      %s304 = smul.addr %s303, 8
      %s305 = scalar_lea.vmem %s6, %s304
      // Predicated region
      $region45: #{resnet_block_forward.5} parent=43 // pred_check
        %p306 = pneg %p171
      $region46: #{resnet_block_forward.5} parent=43 // pred_check_branch
        %308 = sbr.rel (%p306) target = $region48
      $region47: #{resnet_block_forward.5} parent=43 // pred_region
        _
      $region48: #{resnet_block_forward.5} parent=43 // pred_fallthru
        _
    $region44: #{resnet_block_forward.5} parent=5 // pred_fallthru
      _
    %p309 = scmp.le.s32.totalorder 2, %s12
    // Predicated region
    $region49: #{resnet_block_forward.5} parent=5 // pred_check
      %p310 = pneg %p309
    $region50: #{resnet_block_forward.5} parent=5 // pred_check_branch
      %312 = sbr.rel (%p310) target = $region52
    $region51: #{resnet_block_forward.5} parent=5 // pred_region
      %s313 = ssub.s32 %s12, 2
      // Predicated region
      $region53: #{resnet_block_forward.5} parent=51 // pred_check
        %p314 = pneg %p177
      $region54: #{resnet_block_forward.5} parent=51 // pred_check_branch
        %316 = sbr.rel (%p314) target = $region56
      $region55: #{resnet_block_forward.5} parent=51 // pred_region
        %p317 = scmp.lt.s32.totalorder %s18, 1
        %s318 = scalar_select %p317, %s18, 1
        %s319 = smul.addr %s318, 8
        %s320 = scalar_lea.vmem %s6, %s319
      $region56: #{resnet_block_forward.5} parent=51 // pred_fallthru
        _
    $region52: #{resnet_block_forward.5} parent=5 // pred_fallthru
      _
  $region6: #{resnet_block_forward.5} parent=0 // loop_footer
    %s16 = sadd.s32 1, %s12
  $region7: #{resnet_block_forward.5} parent=0 // loop_footer_branch
    %11 = sbr.rel target = $region3
  $region8: #{resnet_block_forward.5} parent=0 // loop_exit
    _

</llo_original>
